<compile_context>
chip_gen: v5e
topology: v5e:2x2
jax: 0.10.0
libtpu: 0.0.40
codegen_flags: <defaults>
</compile_context>

<pallas_src>
import functools

import jax
import jax.numpy as jnp
from jax.experimental import pallas as pl
from jax.experimental.pallas import tpu as pltpu


# ----------------------------------------------------------------------------
# Single fused kernel: embed -> relu -> mean -> LSTM -> attention -> fc -> softmax
# ----------------------------------------------------------------------------
def fused_lstm_kernel(idx_ref, wx_ref, emb_ref, wih_ref, whh_ref, b_ref,
                      h0_ref, c0_ref, w1_ref, b1_ref, w2_ref, b2_ref,
                      wfc_ref, bfc_ref, sel_bt_ref, sel_tb_ref,
                      logit_ref, gx_scr, out_scr, *, T, B, C, H):
    TB = T * B
    TBC = idx_ref.shape[0]            # T*B*C flattened code rows
    n_codes = emb_ref.shape[0]

    # ---- stage 1: embed(x) * weight_of_x -> relu -> mean over codes --------
    # embedding gather as a one-hot matmul (vocab is tiny, table in VMEM).
    # TODO(synk): switch to a real gather / scalar-prefetched row DMA once
    # n_codes grows beyond toy size (one-hot is O(TBC * n_codes)).
    onehot = (idx_ref[...] ==
              jax.lax.broadcasted_iota(jnp.int32, (TBC, n_codes), 1)
              ).astype(jnp.float32)                                   # (TBC, NC)
    emb_rows = jnp.dot(onehot, emb_ref[...],
                       preferred_element_type=jnp.float32)            # (TBC, V)
    y = jnp.maximum(emb_rows * wx_ref[...], 0.0)                      # relu

    # mean over the C codes of each (t, b) visit: pooling matmul whose mask is
    # built in-kernel from iota compares (multiply + compare only, no int div).
    row_id = jax.lax.broadcasted_iota(jnp.int32, (TB, TBC), 0)
    col_id = jax.lax.broadcasted_iota(jnp.int32, (TB, TBC), 1)
    in_group = (col_id >= row_id * C) & (col_id < row_id * C + C)
    pool = jnp.where(in_group, 1.0 / C, 0.0)                          # (TB, TBC)
    x_seq = jnp.dot(pool, y, preferred_element_type=jnp.float32)      # (TB, V)

    # ---- stage 2a: hoisted input projection, all 4 gates in one matmul ------
    # (TB, V) @ (V, 4H=128) + (1, 4H): lane-dense scratch, unmasked stores.
    gx_scr[...] = (jnp.dot(x_seq, wih_ref[...],
                           preferred_element_type=jnp.float32)
                   + b_ref[...])                                      # (TB, 4H)

    whh = whh_ref[...]                                                # (H, 4H)

    # ---- stage 2b: serial LSTM recurrence over T ----------------------------
    def step(t, carry):
        h, c = carry
        base = t * B
        gates = gx_scr[pl.ds(base, B), :] + jnp.dot(
            h, whh, preferred_element_type=jnp.float32)               # (B, 4H)
        sig = jax.nn.sigmoid(gates)      # one packed EUP pass (i, f, o)
        th = jnp.tanh(gates)             # one packed EUP pass (g)
        i = sig[:, 0:H]
        f = sig[:, H:2 * H]
        g = th[:, 2 * H:3 * H]
        o = sig[:, 3 * H:4 * H]
        c_new = f * c + i * g
        h_new = o * jnp.tanh(c_new)
        out_scr[pl.ds(base, B), :] = h_new                            # row t*B+b
        return h_new, c_new

    _ = jax.lax.fori_loop(0, T, step, (h0_ref[...], c0_ref[...]), unroll=True)

    # ---- stage 3: self-attention pooling over T + fc + softmax (batched) ----
    enc = out_scr[...]                                                # (TB, H)
    h1 = jnp.maximum(jnp.dot(enc, w1_ref[...],
                             preferred_element_type=jnp.float32)
                     + b1_ref[...], 0.0)                              # (TB, 64)
    energy = (jnp.dot(h1, w2_ref[...], preferred_element_type=jnp.float32)
              + b2_ref[...])                                          # (TB, 1)

    # per-batch softmax over T (row r = t*B + b belongs to batch b).
    # Per-batch max shift (not global) so no batch can underflow to den == 0.
    sel_tb = sel_tb_ref[...]                                          # (TB, B)
    e_tb = jnp.where(sel_tb > 0.5, energy, -jnp.inf)                  # (TB, B)
    m_b = jnp.max(e_tb, axis=0, keepdims=True)                        # (1, B)
    m_rows = jnp.sum(sel_tb * m_b, axis=1, keepdims=True)             # (TB, 1)
    p = jnp.exp(energy - m_rows)                                      # (TB, 1)

    sel_bt = sel_bt_ref[...]                                          # (B, TB)
    num = jnp.dot(sel_bt, p * enc, preferred_element_type=jnp.float32)  # (B, H)
    den = jnp.dot(sel_bt, p, preferred_element_type=jnp.float32)        # (B, 1)
    pooled = num / den                                                # (B, H)

    # dropout is identity at inference
    logits = (jnp.dot(pooled, wfc_ref[...],
                      preferred_element_type=jnp.float32) + bfc_ref[...])
    logits = logits - jnp.max(logits, axis=1, keepdims=True)
    e = jnp.exp(logits)
    logit_ref[...] = e / jnp.sum(e, axis=1, keepdims=True)


# ----------------------------------------------------------------------------
# One-time host-side weight re-layout (not repeated per forward call)
# ----------------------------------------------------------------------------
def prepare_params(params):
    H = params["h0"].shape[-1]
    return {
        "emb": params["emb"].astype(jnp.float32),
        # (4H, V)/(4H, H) -> (V, 4H)/(H, 4H): gate blocks [i|f|g|o] along lanes
        "wih": jnp.transpose(params["w_ih"]).astype(jnp.float32),
        "whh": jnp.transpose(params["w_hh"]).astype(jnp.float32),
        "b":   (params["b_ih"] + params["b_hh"]).reshape(1, 4 * H).astype(jnp.float32),
        "h0":  params["h0"].astype(jnp.float32),
        "c0":  params["c0"].astype(jnp.float32),
        "w1":  jnp.transpose(params["w1"]).astype(jnp.float32),
        "b1":  params["b1"].reshape(1, -1).astype(jnp.float32),
        "w2":  jnp.transpose(params["w2"]).astype(jnp.float32),
        "b2":  params["b2"].reshape(1, 1).astype(jnp.float32),
        "wfc": jnp.transpose(params["w_fc"]).astype(jnp.float32),
        "bfc": params["b_fc"].reshape(1, -1).astype(jnp.float32),
    }


# ----------------------------------------------------------------------------
# Wrapper: single pallas_call (no grid; everything resident in VMEM)
# ----------------------------------------------------------------------------
def lstm_model_forward(x_idx, weight_of_x, prep):
    T, B, C = x_idx.shape
    H = prep["h0"].shape[-1]
    L = prep["wfc"].shape[1]
    TB, TBC = T * B, T * B * C

    idx_flat = x_idx.reshape(TBC, 1).astype(jnp.int32)
    wx_flat = weight_of_x.reshape(TBC, 1).astype(jnp.float32)

    # tiny O(B^2*T) batch-selection masks (kept host-side to avoid in-kernel
    # integer mod; the big O((T*B)^2*C) pooling mask is built in-kernel).
    bid = jnp.arange(TB, dtype=jnp.int32) % B
    sel_bt = (bid[None, :] ==
              jnp.arange(B, dtype=jnp.int32)[:, None]).astype(jnp.float32)  # (B, TB)
    sel_tb = jnp.transpose(sel_bt)                                          # (TB, B)

    kernel = functools.partial(fused_lstm_kernel, T=T, B=B, C=C, H=H)
    return pl.pallas_call(
        kernel,
        out_shape=jax.ShapeDtypeStruct((B, L), jnp.float32),
        scratch_shapes=[pltpu.VMEM((TB, 4 * H), jnp.float32),   # packed x-proj
                        pltpu.VMEM((TB, H), jnp.float32)],      # lstm outputs
        compiler_params=pltpu.CompilerParams(
            # explicit scoped-VMEM budget (v5e default is only 16 MiB; this
            # stays well under v7x's 64 MiB physical ceiling).
            vmem_limit_bytes=32 * 1024 * 1024),
    )(idx_flat, wx_flat, prep["emb"], prep["wih"], prep["whh"], prep["b"],
      prep["h0"], prep["c0"], prep["w1"], prep["b1"], prep["w2"], prep["b2"],
      prep["wfc"], prep["bfc"], sel_bt, sel_tb)


if __name__ == "__main__":
    # options: n_diagnosis_codes=50, visit_size=32, hidden_size=32, n_labels=2
    T, B, C = 8, 2, 5
    n_codes, V, H, L = 50, 32, 32, 2

    key = jax.random.PRNGKey(0)
    ks = jax.random.split(key, 16)
    s = 0.1
    params = {
        "emb":  jax.random.normal(ks[0], (n_codes, V), jnp.float32) * s,
        "w_ih": jax.random.normal(ks[1], (4 * H, V), jnp.float32) * s,
        "w_hh": jax.random.normal(ks[2], (4 * H, H), jnp.float32) * s,
        "b_ih": jax.random.normal(ks[3], (4 * H,), jnp.float32) * s,
        "b_hh": jax.random.normal(ks[4], (4 * H,), jnp.float32) * s,
        "w1":   jax.random.normal(ks[5], (64, H), jnp.float32) * s,
        "b1":   jax.random.normal(ks[6], (64,), jnp.float32) * s,
        "w2":   jax.random.normal(ks[7], (1, 64), jnp.float32) * s,
        "b2":   jax.random.normal(ks[8], (1,), jnp.float32) * s,
        "w_fc": jax.random.normal(ks[9], (L, H), jnp.float32) * s,
        "b_fc": jax.random.normal(ks[10], (L,), jnp.float32) * s,
        # torch.randn h0/c0 in the reference -> deterministic fixed params here
        "h0":   jax.random.normal(ks[11], (B, H), jnp.float32),
        "c0":   jax.random.normal(ks[12], (B, H), jnp.float32),
    }

    x_idx = jax.random.randint(ks[13], (T, B, C), 0, n_codes, dtype=jnp.int32)
    weight_of_x = jax.random.uniform(ks[14], (T, B, C), jnp.float32)

    prep = prepare_params(params)
    logit = jax.jit(lstm_model_forward)(x_idx, weight_of_x, prep)
    logit = jax.block_until_ready(logit)
    assert logit.shape == (B, L)
    assert bool(jnp.all(jnp.isfinite(logit)))
    # softmax rows must sum to 1
    assert bool(jnp.allclose(jnp.sum(logit, axis=1), 1.0, atol=1e-5))
    print("KERNEL_OK")
</pallas_src>

<mosaic_0001>
module attributes {stable_mosaic.version = 11 : i64} {
  func.func @fused_lstm_kernel(%arg0: memref<80x1xi32, #tpu.memory_space<vmem>>, %arg1: memref<80x1xf32, #tpu.memory_space<vmem>>, %arg2: memref<50x32xf32, #tpu.memory_space<vmem>>, %arg3: memref<32x128xf32, #tpu.memory_space<vmem>>, %arg4: memref<32x128xf32, #tpu.memory_space<vmem>>, %arg5: memref<1x128xf32, #tpu.memory_space<vmem>>, %arg6: memref<2x32xf32, #tpu.memory_space<vmem>>, %arg7: memref<2x32xf32, #tpu.memory_space<vmem>>, %arg8: memref<32x64xf32, #tpu.memory_space<vmem>>, %arg9: memref<1x64xf32, #tpu.memory_space<vmem>>, %arg10: memref<64x1xf32, #tpu.memory_space<vmem>>, %arg11: memref<1x1xf32, #tpu.memory_space<vmem>>, %arg12: memref<32x2xf32, #tpu.memory_space<vmem>>, %arg13: memref<1x2xf32, #tpu.memory_space<vmem>>, %arg14: memref<2x16xf32, #tpu.memory_space<vmem>>, %arg15: memref<16x2xf32, #tpu.memory_space<vmem>>, %arg16: memref<2x2xf32, #tpu.memory_space<vmem>>, %arg17: memref<16x128xf32, #tpu.memory_space<vmem>>, %arg18: memref<16x32xf32, #tpu.memory_space<vmem>>) attributes {dimension_semantics = [], scalar_prefetch = 0 : i64, scratch_operands = 2 : i64, tpu.core_type = #tpu.core_type<tc>} {
    %c0 = arith.constant 0 : index
    %c0_0 = arith.constant 0 : index
    %0 = vector.load %arg0[%c0, %c0_0] : memref<80x1xi32, #tpu.memory_space<vmem>>, vector<80x1xi32>
    %1 = tpu.iota {dimensions = array<i32: 1>} : vector<80x50xi32>
    %2 = vector.broadcast %0 : vector<80x1xi32> to vector<80x50xi32>
    %3 = arith.cmpi eq, %2, %1 : vector<80x50xi32>
    %4 = arith.extui %3 : vector<80x50xi1> to vector<80x50xi32>
    %5 = arith.sitofp %4 : vector<80x50xi32> to vector<80x50xf32>
    %c0_1 = arith.constant 0 : index
    %c0_2 = arith.constant 0 : index
    %6 = vector.load %arg2[%c0_1, %c0_2] : memref<50x32xf32, #tpu.memory_space<vmem>>, vector<50x32xf32>
    %cst = arith.constant dense<0.000000e+00> : vector<80x32xf32>
    %7 = tpu.matmul %5, %6, %cst {dimension_numbers = #tpu.dot_dimension_numbers<[1], [0], [0], [1], [0, 0, 1, 1], [], []>} : vector<80x50xf32>, vector<50x32xf32>, vector<80x32xf32> -> vector<80x32xf32>
    %c0_3 = arith.constant 0 : index
    %c0_4 = arith.constant 0 : index
    %8 = vector.load %arg1[%c0_3, %c0_4] : memref<80x1xf32, #tpu.memory_space<vmem>>, vector<80x1xf32>
    %9 = vector.broadcast %8 : vector<80x1xf32> to vector<80x32xf32>
    %10 = arith.mulf %7, %9 : vector<80x32xf32>
    %cst_5 = arith.constant 0.000000e+00 : f32
    %11 = vector.broadcast %cst_5 : f32 to vector<80x32xf32>
    %12 = arith.maximumf %10, %11 : vector<80x32xf32>
    %13 = tpu.iota {dimensions = array<i32: 0>} : vector<16x80xi32>
    %14 = tpu.iota {dimensions = array<i32: 1>} : vector<16x80xi32>
    %c5_i32 = arith.constant 5 : i32
    %15 = vector.broadcast %c5_i32 : i32 to vector<16x80xi32>
    %16 = arith.muli %13, %15 : vector<16x80xi32>
    %17 = arith.cmpi sge, %14, %16 : vector<16x80xi32>
    %c5_i32_6 = arith.constant 5 : i32
    %18 = vector.broadcast %c5_i32_6 : i32 to vector<16x80xi32>
    %19 = arith.muli %13, %18 : vector<16x80xi32>
    %c5_i32_7 = arith.constant 5 : i32
    %20 = vector.broadcast %c5_i32_7 : i32 to vector<16x80xi32>
    %21 = arith.addi %19, %20 : vector<16x80xi32>
    %22 = arith.cmpi slt, %14, %21 : vector<16x80xi32>
    %23 = arith.andi %17, %22 : vector<16x80xi1>
    %cst_8 = arith.constant 2.000000e-01 : f32
    %cst_9 = arith.constant 0.000000e+00 : f32
    %24 = vector.broadcast %cst_8 : f32 to vector<16x80xf32>
    %25 = vector.broadcast %cst_9 : f32 to vector<16x80xf32>
    %26 = arith.select %23, %24, %25 : vector<16x80xi1>, vector<16x80xf32>
    %cst_10 = arith.constant dense<0.000000e+00> : vector<16x32xf32>
    %27 = tpu.matmul %26, %12, %cst_10 {dimension_numbers = #tpu.dot_dimension_numbers<[1], [0], [0], [1], [0, 0, 1, 1], [], []>} : vector<16x80xf32>, vector<80x32xf32>, vector<16x32xf32> -> vector<16x32xf32>
    %c0_11 = arith.constant 0 : index
    %c0_12 = arith.constant 0 : index
    %28 = vector.load %arg3[%c0_11, %c0_12] : memref<32x128xf32, #tpu.memory_space<vmem>>, vector<32x128xf32>
    %cst_13 = arith.constant dense<0.000000e+00> : vector<16x128xf32>
    %29 = tpu.matmul %27, %28, %cst_13 {dimension_numbers = #tpu.dot_dimension_numbers<[1], [0], [0], [1], [0, 0, 1, 1], [], []>} : vector<16x32xf32>, vector<32x128xf32>, vector<16x128xf32> -> vector<16x128xf32>
    %c0_14 = arith.constant 0 : index
    %c0_15 = arith.constant 0 : index
    %30 = vector.load %arg5[%c0_14, %c0_15] : memref<1x128xf32, #tpu.memory_space<vmem>>, vector<1x128xf32>
    %31 = vector.broadcast %30 : vector<1x128xf32> to vector<16x128xf32>
    %32 = arith.addf %29, %31 : vector<16x128xf32>
    %c0_16 = arith.constant 0 : index
    %c0_17 = arith.constant 0 : index
    %33 = vector.load %arg17[%c0_16, %c0_17] : memref<16x128xf32, #tpu.memory_space<vmem>>, vector<16x128xf32>
    tpu.vector_store %arg17[%c0_16, %c0_17], %32 {strides = array<i32>} : memref<16x128xf32, #tpu.memory_space<vmem>>, vector<16x128xf32>,
    %c0_18 = arith.constant 0 : index
    %c0_19 = arith.constant 0 : index
    %34 = vector.load %arg4[%c0_18, %c0_19] : memref<32x128xf32, #tpu.memory_space<vmem>>, vector<32x128xf32>
    %c0_20 = arith.constant 0 : index
    %c0_21 = arith.constant 0 : index
    %35 = vector.load %arg6[%c0_20, %c0_21] : memref<2x32xf32, #tpu.memory_space<vmem>>, vector<2x32xf32>
    %c0_22 = arith.constant 0 : index
    %c0_23 = arith.constant 0 : index
    %36 = vector.load %arg7[%c0_22, %c0_23] : memref<2x32xf32, #tpu.memory_space<vmem>>, vector<2x32xf32>
    %c0_i32 = arith.constant 0 : i32
    %c2_i32 = arith.constant 2 : i32
    %37 = arith.muli %c0_i32, %c2_i32 : i32
    %38 = arith.index_cast %37 : i32 to index
    %c0_24 = arith.constant 0 : index
    %39 = vector.load %arg17[%38, %c0_24] : memref<16x128xf32, #tpu.memory_space<vmem>>, vector<2x128xf32>
    %cst_25 = arith.constant dense<0.000000e+00> : vector<2x128xf32>
    %40 = tpu.matmul %35, %34, %cst_25 {dimension_numbers = #tpu.dot_dimension_numbers<[1], [0], [0], [1], [0, 0, 1, 1], [], []>} : vector<2x32xf32>, vector<32x128xf32>, vector<2x128xf32> -> vector<2x128xf32>
    %41 = arith.addf %39, %40 : vector<2x128xf32>
    %42 = arith.negf %41 : vector<2x128xf32>
    %43 = math.exp %42 : vector<2x128xf32>
    %cst_26 = arith.constant 1.000000e+00 : f32
    %44 = vector.broadcast %cst_26 : f32 to vector<2x128xf32>
    %45 = arith.addf %44, %43 : vector<2x128xf32>
    %46 = arith.divf %44, %45 : vector<2x128xf32>
    %47 = math.tanh %41 : vector<2x128xf32>
    %48 = vector.extract_strided_slice %46 {offsets = [0, 0], sizes = [2, 32], strides = [1, 1]} : vector<2x128xf32> to vector<2x32xf32>
    %49 = vector.extract_strided_slice %46 {offsets = [0, 32], sizes = [2, 32], strides = [1, 1]} : vector<2x128xf32> to vector<2x32xf32>
    %50 = vector.extract_strided_slice %47 {offsets = [0, 64], sizes = [2, 32], strides = [1, 1]} : vector<2x128xf32> to vector<2x32xf32>
    %51 = vector.extract_strided_slice %46 {offsets = [0, 96], sizes = [2, 32], strides = [1, 1]} : vector<2x128xf32> to vector<2x32xf32>
    %52 = arith.mulf %49, %36 : vector<2x32xf32>
    %53 = arith.mulf %48, %50 : vector<2x32xf32>
    %54 = arith.addf %52, %53 : vector<2x32xf32>
    %55 = math.tanh %54 : vector<2x32xf32>
    %56 = arith.mulf %51, %55 : vector<2x32xf32>
    %57 = arith.index_cast %37 : i32 to index
    %c0_27 = arith.constant 0 : index
    %58 = vector.load %arg18[%57, %c0_27] : memref<16x32xf32, #tpu.memory_space<vmem>>, vector<2x32xf32>
    tpu.vector_store %arg18[%57, %c0_27], %56 {strides = array<i32>} : memref<16x32xf32, #tpu.memory_space<vmem>>, vector<2x32xf32>,
    %c1_i32 = arith.constant 1 : i32
    %c2_i32_28 = arith.constant 2 : i32
    %59 = arith.muli %c1_i32, %c2_i32_28 : i32
    %60 = arith.index_cast %59 : i32 to index
    %c0_29 = arith.constant 0 : index
    %61 = vector.load %arg17[%60, %c0_29] : memref<16x128xf32, #tpu.memory_space<vmem>>, vector<2x128xf32>
    %cst_30 = arith.constant dense<0.000000e+00> : vector<2x128xf32>
    %62 = tpu.matmul %56, %34, %cst_30 {dimension_numbers = #tpu.dot_dimension_numbers<[1], [0], [0], [1], [0, 0, 1, 1], [], []>} : vector<2x32xf32>, vector<32x128xf32>, vector<2x128xf32> -> vector<2x128xf32>
    %63 = arith.addf %61, %62 : vector<2x128xf32>
    %64 = arith.negf %63 : vector<2x128xf32>
    %65 = math.exp %64 : vector<2x128xf32>
    %cst_31 = arith.constant 1.000000e+00 : f32
    %66 = vector.broadcast %cst_31 : f32 to vector<2x128xf32>
    %67 = arith.addf %66, %65 : vector<2x128xf32>
    %68 = arith.divf %66, %67 : vector<2x128xf32>
    %69 = math.tanh %63 : vector<2x128xf32>
    %70 = vector.extract_strided_slice %68 {offsets = [0, 0], sizes = [2, 32], strides = [1, 1]} : vector<2x128xf32> to vector<2x32xf32>
    %71 = vector.extract_strided_slice %68 {offsets = [0, 32], sizes = [2, 32], strides = [1, 1]} : vector<2x128xf32> to vector<2x32xf32>
    %72 = vector.extract_strided_slice %69 {offsets = [0, 64], sizes = [2, 32], strides = [1, 1]} : vector<2x128xf32> to vector<2x32xf32>
    %73 = vector.extract_strided_slice %68 {offsets = [0, 96], sizes = [2, 32], strides = [1, 1]} : vector<2x128xf32> to vector<2x32xf32>
    %74 = arith.mulf %71, %54 : vector<2x32xf32>
    %75 = arith.mulf %70, %72 : vector<2x32xf32>
    %76 = arith.addf %74, %75 : vector<2x32xf32>
    %77 = math.tanh %76 : vector<2x32xf32>
    %78 = arith.mulf %73, %77 : vector<2x32xf32>
    %79 = arith.index_cast %59 : i32 to index
    %c0_32 = arith.constant 0 : index
    %80 = vector.load %arg18[%79, %c0_32] : memref<16x32xf32, #tpu.memory_space<vmem>>, vector<2x32xf32>
    tpu.vector_store %arg18[%79, %c0_32], %78 {strides = array<i32>} : memref<16x32xf32, #tpu.memory_space<vmem>>, vector<2x32xf32>,
    %c2_i32_33 = arith.constant 2 : i32
    %c2_i32_34 = arith.constant 2 : i32
    %81 = arith.muli %c2_i32_33, %c2_i32_34 : i32
    %82 = arith.index_cast %81 : i32 to index
    %c0_35 = arith.constant 0 : index
    %83 = vector.load %arg17[%82, %c0_35] : memref<16x128xf32, #tpu.memory_space<vmem>>, vector<2x128xf32>
    %cst_36 = arith.constant dense<0.000000e+00> : vector<2x128xf32>
    %84 = tpu.matmul %78, %34, %cst_36 {dimension_numbers = #tpu.dot_dimension_numbers<[1], [0], [0], [1], [0, 0, 1, 1], [], []>} : vector<2x32xf32>, vector<32x128xf32>, vector<2x128xf32> -> vector<2x128xf32>
    %85 = arith.addf %83, %84 : vector<2x128xf32>
    %86 = arith.negf %85 : vector<2x128xf32>
    %87 = math.exp %86 : vector<2x128xf32>
    %cst_37 = arith.constant 1.000000e+00 : f32
    %88 = vector.broadcast %cst_37 : f32 to vector<2x128xf32>
    %89 = arith.addf %88, %87 : vector<2x128xf32>
    %90 = arith.divf %88, %89 : vector<2x128xf32>
    %91 = math.tanh %85 : vector<2x128xf32>
    %92 = vector.extract_strided_slice %90 {offsets = [0, 0], sizes = [2, 32], strides = [1, 1]} : vector<2x128xf32> to vector<2x32xf32>
    %93 = vector.extract_strided_slice %90 {offsets = [0, 32], sizes = [2, 32], strides = [1, 1]} : vector<2x128xf32> to vector<2x32xf32>
    %94 = vector.extract_strided_slice %91 {offsets = [0, 64], sizes = [2, 32], strides = [1, 1]} : vector<2x128xf32> to vector<2x32xf32>
    %95 = vector.extract_strided_slice %90 {offsets = [0, 96], sizes = [2, 32], strides = [1, 1]} : vector<2x128xf32> to vector<2x32xf32>
    %96 = arith.mulf %93, %76 : vector<2x32xf32>
    %97 = arith.mulf %92, %94 : vector<2x32xf32>
    %98 = arith.addf %96, %97 : vector<2x32xf32>
    %99 = math.tanh %98 : vector<2x32xf32>
    %100 = arith.mulf %95, %99 : vector<2x32xf32>
    %101 = arith.index_cast %81 : i32 to index
    %c0_38 = arith.constant 0 : index
    %102 = vector.load %arg18[%101, %c0_38] : memref<16x32xf32, #tpu.memory_space<vmem>>, vector<2x32xf32>
    tpu.vector_store %arg18[%101, %c0_38], %100 {strides = array<i32>} : memref<16x32xf32, #tpu.memory_space<vmem>>, vector<2x32xf32>,
    %c3_i32 = arith.constant 3 : i32
    %c2_i32_39 = arith.constant 2 : i32
    %103 = arith.muli %c3_i32, %c2_i32_39 : i32
    %104 = arith.index_cast %103 : i32 to index
    %c0_40 = arith.constant 0 : index
    %105 = vector.load %arg17[%104, %c0_40] : memref<16x128xf32, #tpu.memory_space<vmem>>, vector<2x128xf32>
    %cst_41 = arith.constant dense<0.000000e+00> : vector<2x128xf32>
    %106 = tpu.matmul %100, %34, %cst_41 {dimension_numbers = #tpu.dot_dimension_numbers<[1], [0], [0], [1], [0, 0, 1, 1], [], []>} : vector<2x32xf32>, vector<32x128xf32>, vector<2x128xf32> -> vector<2x128xf32>
    %107 = arith.addf %105, %106 : vector<2x128xf32>
    %108 = arith.negf %107 : vector<2x128xf32>
    %109 = math.exp %108 : vector<2x128xf32>
    %cst_42 = arith.constant 1.000000e+00 : f32
    %110 = vector.broadcast %cst_42 : f32 to vector<2x128xf32>
    %111 = arith.addf %110, %109 : vector<2x128xf32>
    %112 = arith.divf %110, %111 : vector<2x128xf32>
    %113 = math.tanh %107 : vector<2x128xf32>
    %114 = vector.extract_strided_slice %112 {offsets = [0, 0], sizes = [2, 32], strides = [1, 1]} : vector<2x128xf32> to vector<2x32xf32>
    %115 = vector.extract_strided_slice %112 {offsets = [0, 32], sizes = [2, 32], strides = [1, 1]} : vector<2x128xf32> to vector<2x32xf32>
    %116 = vector.extract_strided_slice %113 {offsets = [0, 64], sizes = [2, 32], strides = [1, 1]} : vector<2x128xf32> to vector<2x32xf32>
    %117 = vector.extract_strided_slice %112 {offsets = [0, 96], sizes = [2, 32], strides = [1, 1]} : vector<2x128xf32> to vector<2x32xf32>
    %118 = arith.mulf %115, %98 : vector<2x32xf32>
    %119 = arith.mulf %114, %116 : vector<2x32xf32>
    %120 = arith.addf %118, %119 : vector<2x32xf32>
    %121 = math.tanh %120 : vector<2x32xf32>
    %122 = arith.mulf %117, %121 : vector<2x32xf32>
    %123 = arith.index_cast %103 : i32 to index
    %c0_43 = arith.constant 0 : index
    %124 = vector.load %arg18[%123, %c0_43] : memref<16x32xf32, #tpu.memory_space<vmem>>, vector<2x32xf32>
    tpu.vector_store %arg18[%123, %c0_43], %122 {strides = array<i32>} : memref<16x32xf32, #tpu.memory_space<vmem>>, vector<2x32xf32>,
    %c4_i32 = arith.constant 4 : i32
    %c2_i32_44 = arith.constant 2 : i32
    %125 = arith.muli %c4_i32, %c2_i32_44 : i32
    %126 = arith.index_cast %125 : i32 to index
    %c0_45 = arith.constant 0 : index
    %127 = vector.load %arg17[%126, %c0_45] : memref<16x128xf32, #tpu.memory_space<vmem>>, vector<2x128xf32>
    %cst_46 = arith.constant dense<0.000000e+00> : vector<2x128xf32>
    %128 = tpu.matmul %122, %34, %cst_46 {dimension_numbers = #tpu.dot_dimension_numbers<[1], [0], [0], [1], [0, 0, 1, 1], [], []>} : vector<2x32xf32>, vector<32x128xf32>, vector<2x128xf32> -> vector<2x128xf32>
    %129 = arith.addf %127, %128 : vector<2x128xf32>
    %130 = arith.negf %129 : vector<2x128xf32>
    %131 = math.exp %130 : vector<2x128xf32>
    %cst_47 = arith.constant 1.000000e+00 : f32
    %132 = vector.broadcast %cst_47 : f32 to vector<2x128xf32>
    %133 = arith.addf %132, %131 : vector<2x128xf32>
    %134 = arith.divf %132, %133 : vector<2x128xf32>
    %135 = math.tanh %129 : vector<2x128xf32>
    %136 = vector.extract_strided_slice %134 {offsets = [0, 0], sizes = [2, 32], strides = [1, 1]} : vector<2x128xf32> to vector<2x32xf32>
    %137 = vector.extract_strided_slice %134 {offsets = [0, 32], sizes = [2, 32], strides = [1, 1]} : vector<2x128xf32> to vector<2x32xf32>
    %138 = vector.extract_strided_slice %135 {offsets = [0, 64], sizes = [2, 32], strides = [1, 1]} : vector<2x128xf32> to vector<2x32xf32>
    %139 = vector.extract_strided_slice %134 {offsets = [0, 96], sizes = [2, 32], strides = [1, 1]} : vector<2x128xf32> to vector<2x32xf32>
    %140 = arith.mulf %137, %120 : vector<2x32xf32>
    %141 = arith.mulf %136, %138 : vector<2x32xf32>
    %142 = arith.addf %140, %141 : vector<2x32xf32>
    %143 = math.tanh %142 : vector<2x32xf32>
    %144 = arith.mulf %139, %143 : vector<2x32xf32>
    %145 = arith.index_cast %125 : i32 to index
    %c0_48 = arith.constant 0 : index
    %146 = vector.load %arg18[%145, %c0_48] : memref<16x32xf32, #tpu.memory_space<vmem>>, vector<2x32xf32>
    tpu.vector_store %arg18[%145, %c0_48], %144 {strides = array<i32>} : memref<16x32xf32, #tpu.memory_space<vmem>>, vector<2x32xf32>,
    %c5_i32_49 = arith.constant 5 : i32
    %c2_i32_50 = arith.constant 2 : i32
    %147 = arith.muli %c5_i32_49, %c2_i32_50 : i32
    %148 = arith.index_cast %147 : i32 to index
    %c0_51 = arith.constant 0 : index
    %149 = vector.load %arg17[%148, %c0_51] : memref<16x128xf32, #tpu.memory_space<vmem>>, vector<2x128xf32>
    %cst_52 = arith.constant dense<0.000000e+00> : vector<2x128xf32>
    %150 = tpu.matmul %144, %34, %cst_52 {dimension_numbers = #tpu.dot_dimension_numbers<[1], [0], [0], [1], [0, 0, 1, 1], [], []>} : vector<2x32xf32>, vector<32x128xf32>, vector<2x128xf32> -> vector<2x128xf32>
    %151 = arith.addf %149, %150 : vector<2x128xf32>
    %152 = arith.negf %151 : vector<2x128xf32>
    %153 = math.exp %152 : vector<2x128xf32>
    %cst_53 = arith.constant 1.000000e+00 : f32
    %154 = vector.broadcast %cst_53 : f32 to vector<2x128xf32>
    %155 = arith.addf %154, %153 : vector<2x128xf32>
    %156 = arith.divf %154, %155 : vector<2x128xf32>
    %157 = math.tanh %151 : vector<2x128xf32>
    %158 = vector.extract_strided_slice %156 {offsets = [0, 0], sizes = [2, 32], strides = [1, 1]} : vector<2x128xf32> to vector<2x32xf32>
    %159 = vector.extract_strided_slice %156 {offsets = [0, 32], sizes = [2, 32], strides = [1, 1]} : vector<2x128xf32> to vector<2x32xf32>
    %160 = vector.extract_strided_slice %157 {offsets = [0, 64], sizes = [2, 32], strides = [1, 1]} : vector<2x128xf32> to vector<2x32xf32>
    %161 = vector.extract_strided_slice %156 {offsets = [0, 96], sizes = [2, 32], strides = [1, 1]} : vector<2x128xf32> to vector<2x32xf32>
    %162 = arith.mulf %159, %142 : vector<2x32xf32>
    %163 = arith.mulf %158, %160 : vector<2x32xf32>
    %164 = arith.addf %162, %163 : vector<2x32xf32>
    %165 = math.tanh %164 : vector<2x32xf32>
    %166 = arith.mulf %161, %165 : vector<2x32xf32>
    %167 = arith.index_cast %147 : i32 to index
    %c0_54 = arith.constant 0 : index
    %168 = vector.load %arg18[%167, %c0_54] : memref<16x32xf32, #tpu.memory_space<vmem>>, vector<2x32xf32>
    tpu.vector_store %arg18[%167, %c0_54], %166 {strides = array<i32>} : memref<16x32xf32, #tpu.memory_space<vmem>>, vector<2x32xf32>,
    %c6_i32 = arith.constant 6 : i32
    %c2_i32_55 = arith.constant 2 : i32
    %169 = arith.muli %c6_i32, %c2_i32_55 : i32
    %170 = arith.index_cast %169 : i32 to index
    %c0_56 = arith.constant 0 : index
    %171 = vector.load %arg17[%170, %c0_56] : memref<16x128xf32, #tpu.memory_space<vmem>>, vector<2x128xf32>
    %cst_57 = arith.constant dense<0.000000e+00> : vector<2x128xf32>
    %172 = tpu.matmul %166, %34, %cst_57 {dimension_numbers = #tpu.dot_dimension_numbers<[1], [0], [0], [1], [0, 0, 1, 1], [], []>} : vector<2x32xf32>, vector<32x128xf32>, vector<2x128xf32> -> vector<2x128xf32>
    %173 = arith.addf %171, %172 : vector<2x128xf32>
    %174 = arith.negf %173 : vector<2x128xf32>
    %175 = math.exp %174 : vector<2x128xf32>
    %cst_58 = arith.constant 1.000000e+00 : f32
    %176 = vector.broadcast %cst_58 : f32 to vector<2x128xf32>
    %177 = arith.addf %176, %175 : vector<2x128xf32>
    %178 = arith.divf %176, %177 : vector<2x128xf32>
    %179 = math.tanh %173 : vector<2x128xf32>
    %180 = vector.extract_strided_slice %178 {offsets = [0, 0], sizes = [2, 32], strides = [1, 1]} : vector<2x128xf32> to vector<2x32xf32>
    %181 = vector.extract_strided_slice %178 {offsets = [0, 32], sizes = [2, 32], strides = [1, 1]} : vector<2x128xf32> to vector<2x32xf32>
    %182 = vector.extract_strided_slice %179 {offsets = [0, 64], sizes = [2, 32], strides = [1, 1]} : vector<2x128xf32> to vector<2x32xf32>
    %183 = vector.extract_strided_slice %178 {offsets = [0, 96], sizes = [2, 32], strides = [1, 1]} : vector<2x128xf32> to vector<2x32xf32>
    %184 = arith.mulf %181, %164 : vector<2x32xf32>
    %185 = arith.mulf %180, %182 : vector<2x32xf32>
    %186 = arith.addf %184, %185 : vector<2x32xf32>
    %187 = math.tanh %186 : vector<2x32xf32>
    %188 = arith.mulf %183, %187 : vector<2x32xf32>
    %189 = arith.index_cast %169 : i32 to index
    %c0_59 = arith.constant 0 : index
    %190 = vector.load %arg18[%189, %c0_59] : memref<16x32xf32, #tpu.memory_space<vmem>>, vector<2x32xf32>
    tpu.vector_store %arg18[%189, %c0_59], %188 {strides = array<i32>} : memref<16x32xf32, #tpu.memory_space<vmem>>, vector<2x32xf32>,
    %c7_i32 = arith.constant 7 : i32
    %c2_i32_60 = arith.constant 2 : i32
    %191 = arith.muli %c7_i32, %c2_i32_60 : i32
    %192 = arith.index_cast %191 : i32 to index
    %c0_61 = arith.constant 0 : index
    %193 = vector.load %arg17[%192, %c0_61] : memref<16x128xf32, #tpu.memory_space<vmem>>, vector<2x128xf32>
    %cst_62 = arith.constant dense<0.000000e+00> : vector<2x128xf32>
    %194 = tpu.matmul %188, %34, %cst_62 {dimension_numbers = #tpu.dot_dimension_numbers<[1], [0], [0], [1], [0, 0, 1, 1], [], []>} : vector<2x32xf32>, vector<32x128xf32>, vector<2x128xf32> -> vector<2x128xf32>
    %195 = arith.addf %193, %194 : vector<2x128xf32>
    %196 = arith.negf %195 : vector<2x128xf32>
    %197 = math.exp %196 : vector<2x128xf32>
    %cst_63 = arith.constant 1.000000e+00 : f32
    %198 = vector.broadcast %cst_63 : f32 to vector<2x128xf32>
    %199 = arith.addf %198, %197 : vector<2x128xf32>
    %200 = arith.divf %198, %199 : vector<2x128xf32>
    %201 = math.tanh %195 : vector<2x128xf32>
    %202 = vector.extract_strided_slice %200 {offsets = [0, 0], sizes = [2, 32], strides = [1, 1]} : vector<2x128xf32> to vector<2x32xf32>
    %203 = vector.extract_strided_slice %200 {offsets = [0, 32], sizes = [2, 32], strides = [1, 1]} : vector<2x128xf32> to vector<2x32xf32>
    %204 = vector.extract_strided_slice %201 {offsets = [0, 64], sizes = [2, 32], strides = [1, 1]} : vector<2x128xf32> to vector<2x32xf32>
    %205 = vector.extract_strided_slice %200 {offsets = [0, 96], sizes = [2, 32], strides = [1, 1]} : vector<2x128xf32> to vector<2x32xf32>
    %206 = arith.mulf %203, %186 : vector<2x32xf32>
    %207 = arith.mulf %202, %204 : vector<2x32xf32>
    %208 = arith.addf %206, %207 : vector<2x32xf32>
    %209 = math.tanh %208 : vector<2x32xf32>
    %210 = arith.mulf %205, %209 : vector<2x32xf32>
    %211 = arith.index_cast %191 : i32 to index
    %c0_64 = arith.constant 0 : index
    %212 = vector.load %arg18[%211, %c0_64] : memref<16x32xf32, #tpu.memory_space<vmem>>, vector<2x32xf32>
    tpu.vector_store %arg18[%211, %c0_64], %210 {strides = array<i32>} : memref<16x32xf32, #tpu.memory_space<vmem>>, vector<2x32xf32>,
    %c8_i32 = arith.constant 8 : i32
    %c0_65 = arith.constant 0 : index
    %c0_66 = arith.constant 0 : index
    %213 = vector.load %arg18[%c0_65, %c0_66] : memref<16x32xf32, #tpu.memory_space<vmem>>, vector<16x32xf32>
    %c0_67 = arith.constant 0 : index
    %c0_68 = arith.constant 0 : index
    %214 = vector.load %arg8[%c0_67, %c0_68] : memref<32x64xf32, #tpu.memory_space<vmem>>, vector<32x64xf32>
    %cst_69 = arith.constant dense<0.000000e+00> : vector<16x64xf32>
    %215 = tpu.matmul %213, %214, %cst_69 {dimension_numbers = #tpu.dot_dimension_numbers<[1], [0], [0], [1], [0, 0, 1, 1], [], []>} : vector<16x32xf32>, vector<32x64xf32>, vector<16x64xf32> -> vector<16x64xf32>
    %c0_70 = arith.constant 0 : index
    %c0_71 = arith.constant 0 : index
    %216 = vector.load %arg9[%c0_70, %c0_71] : memref<1x64xf32, #tpu.memory_space<vmem>>, vector<1x64xf32>
    %217 = vector.broadcast %216 : vector<1x64xf32> to vector<16x64xf32>
    %218 = arith.addf %215, %217 : vector<16x64xf32>
    %cst_72 = arith.constant 0.000000e+00 : f32
    %219 = vector.broadcast %cst_72 : f32 to vector<16x64xf32>
    %220 = arith.maximumf %218, %219 : vector<16x64xf32>
    %c0_73 = arith.constant 0 : index
    %c0_74 = arith.constant 0 : index
    %221 = vector.load %arg10[%c0_73, %c0_74] : memref<64x1xf32, #tpu.memory_space<vmem>>, vector<64x1xf32>
    %cst_75 = arith.constant dense<0.000000e+00> : vector<16x1xf32>
    %222 = tpu.matmul %220, %221, %cst_75 {dimension_numbers = #tpu.dot_dimension_numbers<[1], [0], [0], [1], [0, 0, 1, 1], [], []>} : vector<16x64xf32>, vector<64x1xf32>, vector<16x1xf32> -> vector<16x1xf32>
    %c0_76 = arith.constant 0 : index
    %c0_77 = arith.constant 0 : index
    %223 = vector.load %arg11[%c0_76, %c0_77] : memref<1x1xf32, #tpu.memory_space<vmem>>, vector<1x1xf32>
    %224 = vector.broadcast %223 : vector<1x1xf32> to vector<16x1xf32>
    %225 = arith.addf %222, %224 : vector<16x1xf32>
    %c0_78 = arith.constant 0 : index
    %c0_79 = arith.constant 0 : index
    %226 = vector.load %arg15[%c0_78, %c0_79] : memref<16x2xf32, #tpu.memory_space<vmem>>, vector<16x2xf32>
    %cst_80 = arith.constant 5.000000e-01 : f32
    %227 = vector.broadcast %cst_80 : f32 to vector<16x2xf32>
    %228 = arith.cmpf ogt, %226, %227 : vector<16x2xf32>
    %cst_81 = arith.constant 0xFF800000 : f32
    %229 = vector.shape_cast %225 : vector<16x1xf32> to vector<16x1xf32>
    %230 = vector.broadcast %229 : vector<16x1xf32> to vector<16x2xf32>
    %231 = vector.broadcast %cst_81 : f32 to vector<16x2xf32>
    %232 = arith.select %228, %230, %231 : vector<16x2xi1>, vector<16x2xf32>
    %cst_82 = arith.constant dense<0xFF800000> : vector<2xf32>
    %233 = vector.multi_reduction <maximumf>, %232, %cst_82 [0] : vector<16x2xf32> to vector<2xf32>
    %234 = vector.shape_cast %233 : vector<2xf32> to vector<1x2xf32>
    %235 = vector.broadcast %234 : vector<1x2xf32> to vector<16x2xf32>
    %236 = arith.mulf %226, %235 : vector<16x2xf32>
    %cst_83 = arith.constant dense<0.000000e+00> : vector<16xf32>
    %237 = vector.multi_reduction <add>, %236, %cst_83 [1] : vector<16x2xf32> to vector<16xf32>
    %238 = vector.shape_cast %237 : vector<16xf32> to vector<16x1xf32>
    %239 = arith.subf %225, %238 : vector<16x1xf32>
    %240 = math.exp %239 : vector<16x1xf32>
    %c0_84 = arith.constant 0 : index
    %c0_85 = arith.constant 0 : index
    %241 = vector.load %arg14[%c0_84, %c0_85] : memref<2x16xf32, #tpu.memory_space<vmem>>, vector<2x16xf32>
    %242 = vector.broadcast %240 : vector<16x1xf32> to vector<16x32xf32>
    %243 = arith.mulf %242, %213 : vector<16x32xf32>
    %cst_86 = arith.constant dense<0.000000e+00> : vector<2x32xf32>
    %244 = tpu.matmul %241, %243, %cst_86 {dimension_numbers = #tpu.dot_dimension_numbers<[1], [0], [0], [1], [0, 0, 1, 1], [], []>} : vector<2x16xf32>, vector<16x32xf32>, vector<2x32xf32> -> vector<2x32xf32>
    %cst_87 = arith.constant dense<0.000000e+00> : vector<2x1xf32>
    %245 = tpu.matmul %241, %240, %cst_87 {dimension_numbers = #tpu.dot_dimension_numbers<[1], [0], [0], [1], [0, 0, 1, 1], [], []>} : vector<2x16xf32>, vector<16x1xf32>, vector<2x1xf32> -> vector<2x1xf32>
    %246 = vector.broadcast %245 : vector<2x1xf32> to vector<2x32xf32>
    %247 = arith.divf %244, %246 : vector<2x32xf32>
    %c0_88 = arith.constant 0 : index
    %c0_89 = arith.constant 0 : index
    %248 = vector.load %arg12[%c0_88, %c0_89] : memref<32x2xf32, #tpu.memory_space<vmem>>, vector<32x2xf32>
    %cst_90 = arith.constant dense<0.000000e+00> : vector<2x2xf32>
    %249 = tpu.matmul %247, %248, %cst_90 {dimension_numbers = #tpu.dot_dimension_numbers<[1], [0], [0], [1], [0, 0, 1, 1], [], []>} : vector<2x32xf32>, vector<32x2xf32>, vector<2x2xf32> -> vector<2x2xf32>
    %c0_91 = arith.constant 0 : index
    %c0_92 = arith.constant 0 : index
    %250 = vector.load %arg13[%c0_91, %c0_92] : memref<1x2xf32, #tpu.memory_space<vmem>>, vector<1x2xf32>
    %251 = vector.broadcast %250 : vector<1x2xf32> to vector<2x2xf32>
    %252 = arith.addf %249, %251 : vector<2x2xf32>
    %cst_93 = arith.constant dense<0xFF800000> : vector<2xf32>
    %253 = vector.multi_reduction <maximumf>, %252, %cst_93 [1] : vector<2x2xf32> to vector<2xf32>
    %254 = vector.shape_cast %253 : vector<2xf32> to vector<2x1xf32>
    %255 = vector.broadcast %254 : vector<2x1xf32> to vector<2x2xf32>
    %256 = arith.subf %252, %255 : vector<2x2xf32>
    %257 = math.exp %256 : vector<2x2xf32>
    %cst_94 = arith.constant dense<0.000000e+00> : vector<2xf32>
    %258 = vector.multi_reduction <add>, %257, %cst_94 [1] : vector<2x2xf32> to vector<2xf32>
    %259 = vector.shape_cast %258 : vector<2xf32> to vector<2x1xf32>
    %260 = vector.broadcast %259 : vector<2x1xf32> to vector<2x2xf32>
    %261 = arith.divf %257, %260 : vector<2x2xf32>
    %c0_95 = arith.constant 0 : index
    %c0_96 = arith.constant 0 : index
    %262 = vector.load %arg16[%c0_95, %c0_96] : memref<2x2xf32, #tpu.memory_space<vmem>>, vector<2x2xf32>
    tpu.vector_store %arg16[%c0_95, %c0_96], %261 {strides = array<i32>} : memref<2x2xf32, #tpu.memory_space<vmem>>, vector<2x2xf32>,
    return
  }
}

</mosaic_0001>

<llo_original>
// kernel: lstm_model_forward.1
$region0: #{lstm_model_forward.1}
  #allocation0 [shape = 'u32[]', space=smem, size = 0x4, offset = 0x4, fixed_abs, tag = 'smem constant byte address 0x4 - core index']
  #allocation1 [shape = 'u32[72,128]{1,0:T(1,128)}', space=vmem, size = 0x9000, scoped, tag = 'internal scratch']
  #allocation2 [shape = 'f32[16,128]{1,0:T(8,128)}', space=vmem, size = 0x2000, scoped, tag = 'scratch operand']
  #allocation3 [shape = 'f32[16,32]{1,0:T(8,128)}', space=vmem, size = 0x2000, scoped, tag = 'scratch operand']
  #allocation4 [shape = 'f32[1,1]{1,0:T(1,128)S(1)}', space=vmem, size = 0x200, scoped, tag = 'scoped memory for lstm_model_forward.1']
  %s0 = inlined_call_operand.vmem [shape: s32[80,1], index: 0, kind: input, shape index: {}]
  %s1 = inlined_call_operand.vmem [shape: f32[80,1], index: 1, kind: input, shape index: {}]
  %s2 = inlined_call_operand.vmem [shape: f32[50,32], index: 2, kind: input, shape index: {}]
  %s3 = inlined_call_operand.vmem [shape: f32[32,128], index: 3, kind: input, shape index: {}]
  %s4 = inlined_call_operand.vmem [shape: f32[32,128], index: 4, kind: input, shape index: {}]
  %s5 = inlined_call_operand.vmem [shape: f32[1,128], index: 5, kind: input, shape index: {}]
  %s6 = inlined_call_operand.vmem [shape: f32[2,32], index: 6, kind: input, shape index: {}]
  %s7 = inlined_call_operand.vmem [shape: f32[2,32], index: 7, kind: input, shape index: {}]
  %s8 = inlined_call_operand.vmem [shape: f32[32,64], index: 8, kind: input, shape index: {}]
  %s9 = inlined_call_operand.vmem [shape: f32[1,64], index: 9, kind: input, shape index: {}]
  %s10 = inlined_call_operand.vmem [shape: f32[64,1], index: 10, kind: input, shape index: {}]
  %s11 = inlined_call_operand.<no memory space> [shape: f32[1,1], index: 11, kind: input, shape index: {}]
  %s12 = inlined_call_operand.vmem [shape: f32[32,2], index: 12, kind: input, shape index: {}]
  %s13 = inlined_call_operand.vmem [shape: f32[1,2], index: 13, kind: input, shape index: {}]
  %s14 = inlined_call_operand.vmem [shape: f32[2,16], index: 14, kind: input, shape index: {}]
  %s15 = inlined_call_operand.vmem [shape: f32[16,2], index: 15, kind: input, shape index: {}]
  %s16 = inlined_call_operand.hbm [shape: f32[2,2], index: 16, kind: output, shape index: {}]
  %s17 = sld [smem:[#allocation0]]
  $region74: #{lstm_model_forward.1} parent=0
    _
  %s19 = ssub.s32 1, %s17
  %s20 = scalar_select 0, %s19, %s17
  %v21 = vstv %s11
  %22 = vst [vmem:[#allocation4] sm:$0x1] %v21
  $region1: #{lstm_model_forward.1} parent=0
    #allocation5 [shape = 'u8[1024]{0}', space=vmem, size = 0x400, scoped, tag = 'output window, operand 0, single buffered']
    #allocation6 [shape = 's32[1]{0}', space=sflag, size = 0x4, scoped, tag = 'scoped memory for lstm_model_forward.1']
    %23 = vsyncpa [#allocation6], 0
    // Predicated region
    $region2: #{lstm_model_forward.1} parent=1 // pred_check
      _
    $region3: #{lstm_model_forward.1} parent=1 // pred_check_branch
      %25 = sbr.rel (0) target = $region5
    $region4: #{lstm_model_forward.1} parent=1 // pred_region
      _
    $region5: #{lstm_model_forward.1} parent=1 // pred_fallthru
      _
    // Predicated region
    $region6: #{lstm_model_forward.1} parent=1 // pred_check
      _
    $region7: #{lstm_model_forward.1} parent=1 // pred_check_branch
      %27 = sbr.rel (0) target = $region9
    $region8: #{lstm_model_forward.1} parent=1 // pred_region
      _
    $region9: #{lstm_model_forward.1} parent=1 // pred_fallthru
      _
    // Predicated region
    $region10: #{lstm_model_forward.1} parent=1 // pred_check
      _
    $region11: #{lstm_model_forward.1} parent=1 // pred_check_branch
      %29 = sbr.rel (0) target = $region13
    $region12: #{lstm_model_forward.1} parent=1 // pred_region
      _
    $region13: #{lstm_model_forward.1} parent=1 // pred_fallthru
      _
    // Predicated region
    $region14: #{lstm_model_forward.1} parent=1 // pred_check
      _
    $region15: #{lstm_model_forward.1} parent=1 // pred_check_branch
      %31 = sbr.rel (0) target = $region17
    $region16: #{lstm_model_forward.1} parent=1 // pred_region
      _
    $region17: #{lstm_model_forward.1} parent=1 // pred_fallthru
      _
    // Predicated region
    $region18: #{lstm_model_forward.1} parent=1 // pred_check
      _
    $region19: #{lstm_model_forward.1} parent=1 // pred_check_branch
      %33 = sbr.rel (0) target = $region21
    $region20: #{lstm_model_forward.1} parent=1 // pred_region
      _
    $region21: #{lstm_model_forward.1} parent=1 // pred_fallthru
      _
    // Predicated region
    $region22: #{lstm_model_forward.1} parent=1 // pred_check
      _
    $region23: #{lstm_model_forward.1} parent=1 // pred_check_branch
      %35 = sbr.rel (0) target = $region25
    $region24: #{lstm_model_forward.1} parent=1 // pred_region
      _
    $region25: #{lstm_model_forward.1} parent=1 // pred_fallthru
      _
    // Predicated region
    $region26: #{lstm_model_forward.1} parent=1 // pred_check
      _
    $region27: #{lstm_model_forward.1} parent=1 // pred_check_branch
      %37 = sbr.rel (0) target = $region29
    $region28: #{lstm_model_forward.1} parent=1 // pred_region
      _
    $region29: #{lstm_model_forward.1} parent=1 // pred_fallthru
      _
    // Predicated region
    $region30: #{lstm_model_forward.1} parent=1 // pred_check
      _
    $region31: #{lstm_model_forward.1} parent=1 // pred_check_branch
      %39 = sbr.rel (0) target = $region33
    $region32: #{lstm_model_forward.1} parent=1 // pred_region
      _
    $region33: #{lstm_model_forward.1} parent=1 // pred_fallthru
      _
    // Predicated region
    $region34: #{lstm_model_forward.1} parent=1 // pred_check
      _
    $region35: #{lstm_model_forward.1} parent=1 // pred_check_branch
      %41 = sbr.rel (0) target = $region37
    $region36: #{lstm_model_forward.1} parent=1 // pred_region
      _
    $region37: #{lstm_model_forward.1} parent=1 // pred_fallthru
      _
    // Predicated region
    $region38: #{lstm_model_forward.1} parent=1 // pred_check
      _
    $region39: #{lstm_model_forward.1} parent=1 // pred_check_branch
      %43 = sbr.rel (0) target = $region41
    $region40: #{lstm_model_forward.1} parent=1 // pred_region
      _
    $region41: #{lstm_model_forward.1} parent=1 // pred_fallthru
      _
    // Predicated region
    $region42: #{lstm_model_forward.1} parent=1 // pred_check
      _
    $region43: #{lstm_model_forward.1} parent=1 // pred_check_branch
      %45 = sbr.rel (0) target = $region45
    $region44: #{lstm_model_forward.1} parent=1 // pred_region
      _
    $region45: #{lstm_model_forward.1} parent=1 // pred_fallthru
      _
    // Predicated region
    $region46: #{lstm_model_forward.1} parent=1 // pred_check
      _
    $region47: #{lstm_model_forward.1} parent=1 // pred_check_branch
      %47 = sbr.rel (0) target = $region49
    $region48: #{lstm_model_forward.1} parent=1 // pred_region
      _
    $region49: #{lstm_model_forward.1} parent=1 // pred_fallthru
      _
    // Predicated region
    $region50: #{lstm_model_forward.1} parent=1 // pred_check
      _
    $region51: #{lstm_model_forward.1} parent=1 // pred_check_branch
      %49 = sbr.rel (0) target = $region53
    $region52: #{lstm_model_forward.1} parent=1 // pred_region
      _
    $region53: #{lstm_model_forward.1} parent=1 // pred_fallthru
      _
    // Predicated region
    $region54: #{lstm_model_forward.1} parent=1 // pred_check
      _
    $region55: #{lstm_model_forward.1} parent=1 // pred_check_branch
      %51 = sbr.rel (0) target = $region57
    $region56: #{lstm_model_forward.1} parent=1 // pred_region
      _
    $region57: #{lstm_model_forward.1} parent=1 // pred_fallthru
      _
    // Predicated region
    $region58: #{lstm_model_forward.1} parent=1 // pred_check
      _
    $region59: #{lstm_model_forward.1} parent=1 // pred_check_branch
      %53 = sbr.rel (0) target = $region61
    $region60: #{lstm_model_forward.1} parent=1 // pred_region
      _
    $region61: #{lstm_model_forward.1} parent=1 // pred_fallthru
      _
    // Predicated region
    $region62: #{lstm_model_forward.1} parent=1 // pred_check
      _
    $region63: #{lstm_model_forward.1} parent=1 // pred_check_branch
      %55 = sbr.rel (0) target = $region65
    $region64: #{lstm_model_forward.1} parent=1 // pred_region
      _
    $region65: #{lstm_model_forward.1} parent=1 // pred_fallthru
      _
    %v56 = vld [vmem:[%s0] sm:$0xff]
    %v57 = vld [vmem:[%s0 + $0x8] sm:$0xff]
    %v58 = vld [vmem:[%s0 + $0x10] sm:$0xff]
    %v59 = vld [vmem:[%s0 + $0x18] sm:$0xff]
    %v60 = vld [vmem:[%s0 + $0x20] sm:$0xff]
    %v61 = vld [vmem:[%s0 + $0x28] sm:$0xff]
    %v62 = vld [vmem:[%s0 + $0x30] sm:$0xff]
    %v63 = vld [vmem:[%s0 + $0x38] sm:$0xff]
    %v64 = vld [vmem:[%s0 + $0x40] sm:$0xff]
    %v65 = vld [vmem:[%s0 + $0x48] sm:$0xff]
    %v66 = vlaneseq
    %v67 = vand.u32 %v66, 127
    %68 = vset.pattern.permute.xlu0 0
    %69 = vperm.xlu0 %68, %v56
    %v70 = vpop.permute.xlu0 %69
    %71 = vset.pattern.permute.xlu0 0
    %72 = vperm.xlu0 %71, %v57
    %v73 = vpop.permute.xlu0 %72
    %74 = vset.pattern.permute.xlu0 0
    %75 = vperm.xlu0 %74, %v58
    %v76 = vpop.permute.xlu0 %75
    %77 = vset.pattern.permute.xlu0 0
    %78 = vperm.xlu0 %77, %v59
    %v79 = vpop.permute.xlu0 %78
    %80 = vset.pattern.permute.xlu0 0
    %81 = vperm.xlu0 %80, %v60
    %v82 = vpop.permute.xlu0 %81
    %83 = vset.pattern.permute.xlu0 0
    %84 = vperm.xlu0 %83, %v61
    %v85 = vpop.permute.xlu0 %84
    %86 = vset.pattern.permute.xlu0 0
    %87 = vperm.xlu0 %86, %v62
    %v88 = vpop.permute.xlu0 %87
    %89 = vset.pattern.permute.xlu0 0
    %90 = vperm.xlu0 %89, %v63
    %v91 = vpop.permute.xlu0 %90
    %92 = vset.pattern.permute.xlu0 0
    %93 = vperm.xlu0 %92, %v64
    %v94 = vpop.permute.xlu0 %93
    %95 = vset.pattern.permute.xlu0 0
    %96 = vperm.xlu0 %95, %v65
    %v97 = vpop.permute.xlu0 %96
    %vm98 = vcmp.eq.s32.totalorder %v70, %v67
    %vm99 = vcmp.eq.s32.totalorder %v73, %v67
    %vm100 = vcmp.eq.s32.totalorder %v76, %v67
    %vm101 = vcmp.eq.s32.totalorder %v79, %v67
    %vm102 = vcmp.eq.s32.totalorder %v82, %v67
    %vm103 = vcmp.eq.s32.totalorder %v85, %v67
    %vm104 = vcmp.eq.s32.totalorder %v88, %v67
    %vm105 = vcmp.eq.s32.totalorder %v91, %v67
    %vm106 = vcmp.eq.s32.totalorder %v94, %v67
    %vm107 = vcmp.eq.s32.totalorder %v97, %v67
    %v108 = vsel %vm98, 1, 0
    %v109 = vsel %vm99, 1, 0
    %v110 = vsel %vm100, 1, 0
    %v111 = vsel %vm101, 1, 0
    %v112 = vsel %vm102, 1, 0
    %v113 = vsel %vm103, 1, 0
    %v114 = vsel %vm104, 1, 0
    %v115 = vsel %vm105, 1, 0
    %v116 = vsel %vm106, 1, 0
    %v117 = vsel %vm107, 1, 0
    %v118 = vcvt.s32.f32 %v108
    %v119 = vcvt.s32.f32 %v109
    %v120 = vcvt.s32.f32 %v110
    %v121 = vcvt.s32.f32 %v111
    %v122 = vcvt.s32.f32 %v112
    %v123 = vcvt.s32.f32 %v113
    %v124 = vcvt.s32.f32 %v114
    %v125 = vcvt.s32.f32 %v115
    %v126 = vcvt.s32.f32 %v116
    %v127 = vcvt.s32.f32 %v117
    %v128 = vld [vmem:[%s2] sm:$0xff]
    %v129 = vld [vmem:[%s2 + $0x8] sm:$0xff]
    %v130 = vld [vmem:[%s2 + $0x10] sm:$0xff]
    %v131 = vld [vmem:[%s2 + $0x18] sm:$0xff]
    %v132 = vld [vmem:[%s2 + $0x20] sm:$0xff]
    %v133 = vld [vmem:[%s2 + $0x28] sm:$0xff]
    %v134 = vld [vmem:[%s2 + $0x30] sm:$0x3]
    %vm135 = vcmask 408576
    %v137 = vsel %vm135, %v118, 0
    %v140 = vsel %vm135, %v119, 0
    %v143 = vsel %vm135, %v120, 0
    %v146 = vsel %vm135, %v121, 0
    %v149 = vsel %vm135, %v122, 0
    %v152 = vsel %vm135, %v123, 0
    %v155 = vsel %vm135, %v124, 0
    %v158 = vsel %vm135, %v125, 0
    %v161 = vsel %vm135, %v126, 0
    %v164 = vsel %vm135, %v127, 0
    %vm166 = vcmask 1041408
    %v168 = vsel %vm166, %v134, 0
    %170 = vmatpush.msra.mxu0 0.0
    %171 = vmatpush.msra.mxu0 0.0
    %172 = vmatpush.msra.mxu0 0.0
    %173 = vmatpush.msra.mxu0 0.0
    %174 = vmatpush.msra.mxu0 0.0
    %175 = vmatpush.msra.mxu0 0.0
    %176 = vmatpush.msra.mxu0 0.0
    %177 = vmatpush.msra.mxu0 0.0
    %178 = vmatpush.msra.mxu0 0.0
    %179 = vmatpush.msra.mxu0 %v168
    %180 = vmatpush.msra.mxu0 %v133
    %181 = vmatpush.msra.mxu0 %v132
    %182 = vmatpush.msra.mxu0 %v131
    %183 = vmatpush.msra.mxu0 %v130
    %184 = vmatpush.msra.mxu0 %v129
    %185 = vmatpush.msra.mxu0 %v128
    %186 = vmatmul.f32.gmra.mxu0 %v137
    %v187 = vpop.f32.mrf.mxu0
    %v188 = vadd.f32 0.0, %v187
    %189 = vmatmul.f32.gmra.mxu0 %v140
    %v190 = vpop.f32.mrf.mxu0
    %v191 = vadd.f32 0.0, %v190
    %192 = vmatmul.f32.gmra.mxu0 %v143
    %v193 = vpop.f32.mrf.mxu0
    %v194 = vadd.f32 0.0, %v193
    %195 = vmatmul.f32.gmra.mxu0 %v146
    %v196 = vpop.f32.mrf.mxu0
    %v197 = vadd.f32 0.0, %v196
    %198 = vmatmul.f32.gmra.mxu0 %v149
    %v199 = vpop.f32.mrf.mxu0
    %v200 = vadd.f32 0.0, %v199
    %201 = vmatmul.f32.gmra.mxu0 %v152
    %v202 = vpop.f32.mrf.mxu0
    %v203 = vadd.f32 0.0, %v202
    %204 = vmatmul.f32.gmra.mxu0 %v155
    %v205 = vpop.f32.mrf.mxu0
    %v206 = vadd.f32 0.0, %v205
    %207 = vmatmul.f32.gmra.mxu0 %v158
    %v208 = vpop.f32.mrf.mxu0
    %v209 = vadd.f32 0.0, %v208
    %210 = vmatmul.f32.gmra.mxu0 %v161
    %v211 = vpop.f32.mrf.mxu0
    %v212 = vadd.f32 0.0, %v211
    %213 = vmatmul.f32.gmra.mxu0 %v164
    %v214 = vpop.f32.mrf.mxu0
    %v215 = vadd.f32 0.0, %v214
    %216 = vdwg.mxu0
    %v217 = vld [vmem:[%s1] sm:$0xff]
    %v218 = vld [vmem:[%s1 + $0x8] sm:$0xff]
    %v219 = vld [vmem:[%s1 + $0x10] sm:$0xff]
    %v220 = vld [vmem:[%s1 + $0x18] sm:$0xff]
    %v221 = vld [vmem:[%s1 + $0x20] sm:$0xff]
    %v222 = vld [vmem:[%s1 + $0x28] sm:$0xff]
    %v223 = vld [vmem:[%s1 + $0x30] sm:$0xff]
    %v224 = vld [vmem:[%s1 + $0x38] sm:$0xff]
    %v225 = vld [vmem:[%s1 + $0x40] sm:$0xff]
    %v226 = vld [vmem:[%s1 + $0x48] sm:$0xff]
    %228 = vset.pattern.permute.xlu0 0
    %229 = vperm.xlu0 %228, %v217
    %v230 = vpop.permute.xlu0 %229
    %233 = vset.pattern.permute.xlu0 0
    %234 = vperm.xlu0 %233, %v218
    %v235 = vpop.permute.xlu0 %234
    %238 = vset.pattern.permute.xlu0 0
    %239 = vperm.xlu0 %238, %v219
    %v240 = vpop.permute.xlu0 %239
    %243 = vset.pattern.permute.xlu0 0
    %244 = vperm.xlu0 %243, %v220
    %v245 = vpop.permute.xlu0 %244
    %248 = vset.pattern.permute.xlu0 0
    %249 = vperm.xlu0 %248, %v221
    %v250 = vpop.permute.xlu0 %249
    %253 = vset.pattern.permute.xlu0 0
    %254 = vperm.xlu0 %253, %v222
    %v255 = vpop.permute.xlu0 %254
    %258 = vset.pattern.permute.xlu0 0
    %259 = vperm.xlu0 %258, %v223
    %v260 = vpop.permute.xlu0 %259
    %263 = vset.pattern.permute.xlu0 0
    %264 = vperm.xlu0 %263, %v224
    %v265 = vpop.permute.xlu0 %264
    %268 = vset.pattern.permute.xlu0 0
    %269 = vperm.xlu0 %268, %v225
    %v270 = vpop.permute.xlu0 %269
    %273 = vset.pattern.permute.xlu0 0
    %274 = vperm.xlu0 %273, %v226
    %v275 = vpop.permute.xlu0 %274
    %v277 = vmul.f32 %v188, %v230
    %v278 = vmul.f32 %v191, %v235
    %v279 = vmul.f32 %v194, %v240
    %v280 = vmul.f32 %v197, %v245
    %v281 = vmul.f32 %v200, %v250
    %v282 = vmul.f32 %v203, %v255
    %v283 = vmul.f32 %v206, %v260
    %v284 = vmul.f32 %v209, %v265
    %v285 = vmul.f32 %v212, %v270
    %v286 = vmul.f32 %v215, %v275
    %v287 = vmax.f32 %v277, 0.0
    %v288 = vmax.f32 %v278, 0.0
    %v289 = vmax.f32 %v279, 0.0
    %v290 = vmax.f32 %v280, 0.0
    %v291 = vmax.f32 %v281, 0.0
    %v292 = vmax.f32 %v282, 0.0
    %v293 = vmax.f32 %v283, 0.0
    %v294 = vmax.f32 %v284, 0.0
    %v295 = vmax.f32 %v285, 0.0
    %v296 = vmax.f32 %v286, 0.0
    %v297 = vlaneseq
    %v298 = vshrl.u32 %v297, 7
    %v299 = vadd.s32 %v298, 8
    %v300 = vmul.u32 %v298, 5
    %v301 = vmul.u32 %v299, 5
    %vm302 = vcmp.ge.s32.totalorder %v67, %v300
    %vm303 = vcmp.ge.s32.totalorder %v67, %v301
    %v304 = vadd.s32 %v300, 5
    %v305 = vadd.s32 %v301, 5
    %vm306 = vcmp.lt.s32.totalorder %v67, %v304
    %vm307 = vcmp.lt.s32.totalorder %v67, %v305
    %vm308 = vmand %vm302, %vm306
    %vm309 = vmand %vm303, %vm307
    %v310 = vsel %vm308, 0.2, 0.0
    %v311 = vsel %vm309, 0.2, 0.0
    %vm312 = vcmask 654336
    %v314 = vsel %vm312, %v310, 0
    %v317 = vsel %vm312, %v311, 0
    %319 = vmatpush.msra.mxu0 0.0
    %320 = vmatpush.msra.mxu0 0.0
    %321 = vmatpush.msra.mxu0 0.0
    %322 = vmatpush.msra.mxu0 0.0
    %323 = vmatpush.msra.mxu0 0.0
    %324 = vmatpush.msra.mxu0 0.0
    %325 = vmatpush.msra.mxu0 %v296
    %326 = vmatpush.msra.mxu0 %v295
    %327 = vmatpush.msra.mxu0 %v294
    %328 = vmatpush.msra.mxu0 %v293
    %329 = vmatpush.msra.mxu0 %v292
    %330 = vmatpush.msra.mxu0 %v291
    %331 = vmatpush.msra.mxu0 %v290
    %332 = vmatpush.msra.mxu0 %v289
    %333 = vmatpush.msra.mxu0 %v288
    %334 = vmatpush.msra.mxu0 %v287
    %335 = vmatmul.f32.gmra.mxu0 %v314
    %v336 = vpop.f32.mrf.mxu0
    %v337 = vadd.f32 0.0, %v336
    %338 = vmatmul.f32.gmra.mxu0 %v317
    %v339 = vpop.f32.mrf.mxu0
    %v340 = vadd.f32 0.0, %v339
    %341 = vdwg.mxu0
    %v342 = vld [vmem:[%s3] sm:$0xff]
    %v343 = vld [vmem:[%s3 + $0x8] sm:$0xff]
    %v344 = vld [vmem:[%s3 + $0x10] sm:$0xff]
    %v345 = vld [vmem:[%s3 + $0x18] sm:$0xff]
    %v346 = vld [vmem:[%s5] sm:$0x1]
    %v348 = vperm.slane %v346, 0
    %vm350 = vcmask 261120
    %v352 = vsel %vm350, %v337, 0
    %v355 = vsel %vm350, %v340, 0
    %357 = vmatpush.msra.mxu0 0.0
    %358 = vmatpush.msra.mxu0 0.0
    %359 = vmatpush.msra.mxu0 0.0
    %360 = vmatpush.msra.mxu0 0.0
    %361 = vmatpush.msra.mxu0 0.0
    %362 = vmatpush.msra.mxu0 0.0
    %363 = vmatpush.msra.mxu0 0.0
    %364 = vmatpush.msra.mxu0 0.0
    %365 = vmatpush.msra.mxu0 0.0
    %366 = vmatpush.msra.mxu0 0.0
    %367 = vmatpush.msra.mxu0 0.0
    %368 = vmatpush.msra.mxu0 0.0
    %369 = vmatpush.msra.mxu0 %v345
    %370 = vmatpush.msra.mxu0 %v344
    %371 = vmatpush.msra.mxu0 %v343
    %372 = vmatpush.msra.mxu0 %v342
    %373 = vmatmul.f32.gmra.mxu0 %v352
    %v374 = vpop.f32.mrf.mxu0
    %v375 = vadd.f32 %v348, %v374
    %376 = vmatmul.f32.gmra.mxu0 %v355
    %v377 = vpop.f32.mrf.mxu0
    %v378 = vadd.f32 %v348, %v377
    %379 = vdwg.mxu0
    %380 = vst [vmem:[#allocation2] sm:$0xff] %v375
    %381 = vst [vmem:[#allocation2 + $0x8] sm:$0xff] %v378
    %v382 = vld [vmem:[%s4] sm:$0xff]
    %v383 = vld [vmem:[%s4 + $0x8] sm:$0xff]
    %v384 = vld [vmem:[%s4 + $0x10] sm:$0xff]
    %v385 = vld [vmem:[%s4 + $0x18] sm:$0xff]
    %v386 = vld [vmem:[%s6] sm:$0x3]
    %v387 = vld [vmem:[%s7] sm:$0x3]
    %v388 = vld [vmem:[#allocation2] sm:$0x3]
    %v390 = vsel %vm350, %v386, 0
    %392 = vmatpush.msra.mxu0 0.0
    %393 = vmatpush.msra.mxu0 0.0
    %394 = vmatpush.msra.mxu0 0.0
    %395 = vmatpush.msra.mxu0 0.0
    %396 = vmatpush.msra.mxu0 0.0
    %397 = vmatpush.msra.mxu0 0.0
    %398 = vmatpush.msra.mxu0 0.0
    %399 = vmatpush.msra.mxu0 0.0
    %400 = vmatpush.msra.mxu0 0.0
    %401 = vmatpush.msra.mxu0 0.0
    %402 = vmatpush.msra.mxu0 0.0
    %403 = vmatpush.msra.mxu0 0.0
    %404 = vmatpush.msra.mxu0 %v385
    %405 = vmatpush.msra.mxu0 %v384
    %406 = vmatpush.msra.mxu0 %v383
    %407 = vmatpush.msra.mxu0 %v382
    %408 = vmatmul.f32.gmra.mxu0 %v390
    %v409 = vpop.f32.mrf.mxu0
    %v410 = vadd.f32 0.0, %v409
    %411 = vdwg.mxu0
    %v412 = vadd.f32 %v388, %v410
    %v413 = vxor.u32 %v412, 2147483648
    %v414 = vmul.f32 %v413, 1.442695
    %v415 = vpow.pop %v414
    %v416 = vadd.f32 %v415, 1.0
    %v417 = vrcp.pop %v416
    %v418 = vmul.f32 %v416, %v417
    %v419 = vsub.f32 1.0, %v418
    %v420 = vmul.f32 %v417, %v419
    %v421 = vadd.f32 %v417, %v420
    %vm422 = vweird.f32 %v416
    %vm423 = vweird.f32 %v417
    %vm424 = vmor %vm422, %vm423
    %v425 = vsel %vm424, %v417, %v421
    %v426 = vand.u32 2147483647, %v416
    %vm427 = vcmp.eq.f32.partialorder %v426, 8.507059e+37
    %v428 = vand.u32 %v416, 2147483648
    %v429 = vor.u32 1.1754944e-38, %v428
    %v430 = vsel %vm427, %v429, %v425
    %v431 = vmul.f32 1.0, %v430
    %v432 = vtanh.pop %v412
    %434 = vrot.lane.b32.xlu0 %v387, 32
    %v435 = vpop.permute.xlu0 %434
    %v437 = vmul.f32 %v431, %v435
    %439 = vrot.lane.b32.xlu0 %v432, 64
    %v440 = vpop.permute.xlu0 %439
    %v442 = vmul.f32 %v431, %v440
    %444 = vrot.lane.b32.xlu0 %v442, 32
    %v445 = vpop.permute.xlu0 %444
    %v447 = vadd.f32 %v437, %v445
    %v448 = vtanh.pop %v447
    %450 = vrot.lane.b32.xlu0 %v448, 64
    %v451 = vpop.permute.xlu0 %450
    %v453 = vmul.f32 %v431, %v451
    %455 = vrot.lane.b32.xlu0 %v453, 32
    %v456 = vpop.permute.xlu0 %455
    %vm458 = vcmask 254976
    %459 = vst.msk [vmem:[#allocation3] sm:$0x3] %vm458, %v456
    %v460 = vld [vmem:[#allocation2 + $0x2] sm:$0x3]
    %v461 = vsel %vm350, %v456, 0
    %463 = vmatpush.msra.mxu0 0.0
    %464 = vmatpush.msra.mxu0 0.0
    %465 = vmatpush.msra.mxu0 0.0
    %466 = vmatpush.msra.mxu0 0.0
    %467 = vmatpush.msra.mxu0 0.0
    %468 = vmatpush.msra.mxu0 0.0
    %469 = vmatpush.msra.mxu0 0.0
    %470 = vmatpush.msra.mxu0 0.0
    %471 = vmatpush.msra.mxu0 0.0
    %472 = vmatpush.msra.mxu0 0.0
    %473 = vmatpush.msra.mxu0 0.0
    %474 = vmatpush.msra.mxu0 0.0
    %475 = vmatpush.msra.mxu0 %v385
    %476 = vmatpush.msra.mxu0 %v384
    %477 = vmatpush.msra.mxu0 %v383
    %478 = vmatpush.msra.mxu0 %v382
    %479 = vmatmul.f32.gmra.mxu0 %v461
    %v480 = vpop.f32.mrf.mxu0
    %v481 = vadd.f32 0.0, %v480
    %482 = vdwg.mxu0
    %v483 = vadd.f32 %v460, %v481
    %v484 = vxor.u32 %v483, 2147483648
    %v485 = vmul.f32 %v484, 1.442695
    %v486 = vpow.pop %v485
    %v487 = vadd.f32 %v486, 1.0
    %v488 = vrcp.pop %v487
    %v489 = vmul.f32 %v487, %v488
    %v490 = vsub.f32 1.0, %v489
    %v491 = vmul.f32 %v488, %v490
    %v492 = vadd.f32 %v488, %v491
    %vm493 = vweird.f32 %v487
    %vm494 = vweird.f32 %v488
    %vm495 = vmor %vm493, %vm494
    %v496 = vsel %vm495, %v488, %v492
    %v497 = vand.u32 2147483647, %v487
    %vm498 = vcmp.eq.f32.partialorder %v497, 8.507059e+37
    %v499 = vand.u32 %v487, 2147483648
    %v500 = vor.u32 1.1754944e-38, %v499
    %v501 = vsel %vm498, %v500, %v496
    %v502 = vmul.f32 1.0, %v501
    %v503 = vtanh.pop %v483
    %v504 = vmul.f32 %v502, %v447
    %506 = vrot.lane.b32.xlu0 %v503, 64
    %v507 = vpop.permute.xlu0 %506
    %v509 = vmul.f32 %v502, %v507
    %511 = vrot.lane.b32.xlu0 %v509, 32
    %v512 = vpop.permute.xlu0 %511
    %v514 = vadd.f32 %v504, %v512
    %v515 = vtanh.pop %v514
    %517 = vrot.lane.b32.xlu0 %v515, 64
    %v518 = vpop.permute.xlu0 %517
    %v520 = vmul.f32 %v502, %v518
    %522 = vrot.lane.b32.xlu0 %v520, 32
    %v523 = vpop.permute.xlu0 %522
    %525 = vst.msk [vmem:[#allocation3 + $0x2] sm:$0x3] %vm458, %v523
    %v526 = vld [vmem:[#allocation2 + $0x4] sm:$0x3]
    %v527 = vsel %vm350, %v523, 0
    %529 = vmatpush.msra.mxu0 0.0
    %530 = vmatpush.msra.mxu0 0.0
    %531 = vmatpush.msra.mxu0 0.0
    %532 = vmatpush.msra.mxu0 0.0
    %533 = vmatpush.msra.mxu0 0.0
    %534 = vmatpush.msra.mxu0 0.0
    %535 = vmatpush.msra.mxu0 0.0
    %536 = vmatpush.msra.mxu0 0.0
    %537 = vmatpush.msra.mxu0 0.0
    %538 = vmatpush.msra.mxu0 0.0
    %539 = vmatpush.msra.mxu0 0.0
    %540 = vmatpush.msra.mxu0 0.0
    %541 = vmatpush.msra.mxu0 %v385
    %542 = vmatpush.msra.mxu0 %v384
    %543 = vmatpush.msra.mxu0 %v383
    %544 = vmatpush.msra.mxu0 %v382
    %545 = vmatmul.f32.gmra.mxu0 %v527
    %v546 = vpop.f32.mrf.mxu0
    %v547 = vadd.f32 0.0, %v546
    %548 = vdwg.mxu0
    %v549 = vadd.f32 %v526, %v547
    %v550 = vxor.u32 %v549, 2147483648
    %v551 = vmul.f32 %v550, 1.442695
    %v552 = vpow.pop %v551
    %v553 = vadd.f32 %v552, 1.0
    %v554 = vrcp.pop %v553
    %v555 = vmul.f32 %v553, %v554
    %v556 = vsub.f32 1.0, %v555
    %v557 = vmul.f32 %v554, %v556
    %v558 = vadd.f32 %v554, %v557
    %vm559 = vweird.f32 %v553
    %vm560 = vweird.f32 %v554
    %vm561 = vmor %vm559, %vm560
    %v562 = vsel %vm561, %v554, %v558
    %v563 = vand.u32 2147483647, %v553
    %vm564 = vcmp.eq.f32.partialorder %v563, 8.507059e+37
    %v565 = vand.u32 %v553, 2147483648
    %v566 = vor.u32 1.1754944e-38, %v565
    %v567 = vsel %vm564, %v566, %v562
    %v568 = vmul.f32 1.0, %v567
    %v569 = vtanh.pop %v549
    %v570 = vmul.f32 %v568, %v514
    %572 = vrot.lane.b32.xlu0 %v569, 64
    %v573 = vpop.permute.xlu0 %572
    %v575 = vmul.f32 %v568, %v573
    %577 = vrot.lane.b32.xlu0 %v575, 32
    %v578 = vpop.permute.xlu0 %577
    %v580 = vadd.f32 %v570, %v578
    %v581 = vtanh.pop %v580
    %583 = vrot.lane.b32.xlu0 %v581, 64
    %v584 = vpop.permute.xlu0 %583
    %v586 = vmul.f32 %v568, %v584
    %588 = vrot.lane.b32.xlu0 %v586, 32
    %v589 = vpop.permute.xlu0 %588
    %591 = vst.msk [vmem:[#allocation3 + $0x4] sm:$0x3] %vm458, %v589
    %v592 = vld [vmem:[#allocation2 + $0x6] sm:$0x3]
    %v593 = vsel %vm350, %v589, 0
    %595 = vmatpush.msra.mxu0 0.0
    %596 = vmatpush.msra.mxu0 0.0
    %597 = vmatpush.msra.mxu0 0.0
    %598 = vmatpush.msra.mxu0 0.0
    %599 = vmatpush.msra.mxu0 0.0
    %600 = vmatpush.msra.mxu0 0.0
    %601 = vmatpush.msra.mxu0 0.0
    %602 = vmatpush.msra.mxu0 0.0
    %603 = vmatpush.msra.mxu0 0.0
    %604 = vmatpush.msra.mxu0 0.0
    %605 = vmatpush.msra.mxu0 0.0
    %606 = vmatpush.msra.mxu0 0.0
    %607 = vmatpush.msra.mxu0 %v385
    %608 = vmatpush.msra.mxu0 %v384
    %609 = vmatpush.msra.mxu0 %v383
    %610 = vmatpush.msra.mxu0 %v382
    %611 = vmatmul.f32.gmra.mxu0 %v593
    %v612 = vpop.f32.mrf.mxu0
    %v613 = vadd.f32 0.0, %v612
    %614 = vdwg.mxu0
    %v615 = vadd.f32 %v592, %v613
    %v616 = vxor.u32 %v615, 2147483648
    %v617 = vmul.f32 %v616, 1.442695
    %v618 = vpow.pop %v617
    %v619 = vadd.f32 %v618, 1.0
    %v620 = vrcp.pop %v619
    %v621 = vmul.f32 %v619, %v620
    %v622 = vsub.f32 1.0, %v621
    %v623 = vmul.f32 %v620, %v622
    %v624 = vadd.f32 %v620, %v623
    %vm625 = vweird.f32 %v619
    %vm626 = vweird.f32 %v620
    %vm627 = vmor %vm625, %vm626
    %v628 = vsel %vm627, %v620, %v624
    %v629 = vand.u32 2147483647, %v619
    %vm630 = vcmp.eq.f32.partialorder %v629, 8.507059e+37
    %v631 = vand.u32 %v619, 2147483648
    %v632 = vor.u32 1.1754944e-38, %v631
    %v633 = vsel %vm630, %v632, %v628
    %v634 = vmul.f32 1.0, %v633
    %v635 = vtanh.pop %v615
    %v636 = vmul.f32 %v634, %v580
    %638 = vrot.lane.b32.xlu0 %v635, 64
    %v639 = vpop.permute.xlu0 %638
    %v641 = vmul.f32 %v634, %v639
    %643 = vrot.lane.b32.xlu0 %v641, 32
    %v644 = vpop.permute.xlu0 %643
    %v646 = vadd.f32 %v636, %v644
    %v647 = vtanh.pop %v646
    %649 = vrot.lane.b32.xlu0 %v647, 64
    %v650 = vpop.permute.xlu0 %649
    %v652 = vmul.f32 %v634, %v650
    %654 = vrot.lane.b32.xlu0 %v652, 32
    %v655 = vpop.permute.xlu0 %654
    %657 = vst.msk [vmem:[#allocation3 + $0x6] sm:$0x3] %vm458, %v655
    %v658 = vld [vmem:[#allocation2 + $0x8] sm:$0x3]
    %v659 = vsel %vm350, %v655, 0
    %661 = vmatpush.msra.mxu0 0.0
    %662 = vmatpush.msra.mxu0 0.0
    %663 = vmatpush.msra.mxu0 0.0
    %664 = vmatpush.msra.mxu0 0.0
    %665 = vmatpush.msra.mxu0 0.0
    %666 = vmatpush.msra.mxu0 0.0
    %667 = vmatpush.msra.mxu0 0.0
    %668 = vmatpush.msra.mxu0 0.0
    %669 = vmatpush.msra.mxu0 0.0
    %670 = vmatpush.msra.mxu0 0.0
    %671 = vmatpush.msra.mxu0 0.0
    %672 = vmatpush.msra.mxu0 0.0
    %673 = vmatpush.msra.mxu0 %v385
    %674 = vmatpush.msra.mxu0 %v384
    %675 = vmatpush.msra.mxu0 %v383
    %676 = vmatpush.msra.mxu0 %v382
    %677 = vmatmul.f32.gmra.mxu0 %v659
    %v678 = vpop.f32.mrf.mxu0
    %v679 = vadd.f32 0.0, %v678
    %680 = vdwg.mxu0
    %v681 = vadd.f32 %v658, %v679
    %v682 = vxor.u32 %v681, 2147483648
    %v683 = vmul.f32 %v682, 1.442695
    %v684 = vpow.pop %v683
    %v685 = vadd.f32 %v684, 1.0
    %v686 = vrcp.pop %v685
    %v687 = vmul.f32 %v685, %v686
    %v688 = vsub.f32 1.0, %v687
    %v689 = vmul.f32 %v686, %v688
    %v690 = vadd.f32 %v686, %v689
    %vm691 = vweird.f32 %v685
    %vm692 = vweird.f32 %v686
    %vm693 = vmor %vm691, %vm692
    %v694 = vsel %vm693, %v686, %v690
    %v695 = vand.u32 2147483647, %v685
    %vm696 = vcmp.eq.f32.partialorder %v695, 8.507059e+37
    %v697 = vand.u32 %v685, 2147483648
    %v698 = vor.u32 1.1754944e-38, %v697
    %v699 = vsel %vm696, %v698, %v694
    %v700 = vmul.f32 1.0, %v699
    %v701 = vtanh.pop %v681
    %v702 = vmul.f32 %v700, %v646
    %704 = vrot.lane.b32.xlu0 %v701, 64
    %v705 = vpop.permute.xlu0 %704
    %v707 = vmul.f32 %v700, %v705
    %709 = vrot.lane.b32.xlu0 %v707, 32
    %v710 = vpop.permute.xlu0 %709
    %v712 = vadd.f32 %v702, %v710
    %v713 = vtanh.pop %v712
    %715 = vrot.lane.b32.xlu0 %v713, 64
    %v716 = vpop.permute.xlu0 %715
    %v718 = vmul.f32 %v700, %v716
    %720 = vrot.lane.b32.xlu0 %v718, 32
    %v721 = vpop.permute.xlu0 %720
    %723 = vst.msk [vmem:[#allocation3 + $0x8] sm:$0x3] %vm458, %v721
    %v724 = vld [vmem:[#allocation2 + $0xa] sm:$0x3]
    %v725 = vsel %vm350, %v721, 0
    %727 = vmatpush.msra.mxu0 0.0
    %728 = vmatpush.msra.mxu0 0.0
    %729 = vmatpush.msra.mxu0 0.0
    %730 = vmatpush.msra.mxu0 0.0
    %731 = vmatpush.msra.mxu0 0.0
    %732 = vmatpush.msra.mxu0 0.0
    %733 = vmatpush.msra.mxu0 0.0
    %734 = vmatpush.msra.mxu0 0.0
    %735 = vmatpush.msra.mxu0 0.0
    %736 = vmatpush.msra.mxu0 0.0
    %737 = vmatpush.msra.mxu0 0.0
    %738 = vmatpush.msra.mxu0 0.0
    %739 = vmatpush.msra.mxu0 %v385
    %740 = vmatpush.msra.mxu0 %v384
    %741 = vmatpush.msra.mxu0 %v383
    %742 = vmatpush.msra.mxu0 %v382
    %743 = vmatmul.f32.gmra.mxu0 %v725
    %v744 = vpop.f32.mrf.mxu0
    %v745 = vadd.f32 0.0, %v744
    %746 = vdwg.mxu0
    %v747 = vadd.f32 %v724, %v745
    %v748 = vxor.u32 %v747, 2147483648
    %v749 = vmul.f32 %v748, 1.442695
    %v750 = vpow.pop %v749
    %v751 = vadd.f32 %v750, 1.0
    %v752 = vrcp.pop %v751
    %v753 = vmul.f32 %v751, %v752
    %v754 = vsub.f32 1.0, %v753
    %v755 = vmul.f32 %v752, %v754
    %v756 = vadd.f32 %v752, %v755
    %vm757 = vweird.f32 %v751
    %vm758 = vweird.f32 %v752
    %vm759 = vmor %vm757, %vm758
    %v760 = vsel %vm759, %v752, %v756
    %v761 = vand.u32 2147483647, %v751
    %vm762 = vcmp.eq.f32.partialorder %v761, 8.507059e+37
    %v763 = vand.u32 %v751, 2147483648
    %v764 = vor.u32 1.1754944e-38, %v763
    %v765 = vsel %vm762, %v764, %v760
    %v766 = vmul.f32 1.0, %v765
    %v767 = vtanh.pop %v747
    %v768 = vmul.f32 %v766, %v712
    %770 = vrot.lane.b32.xlu0 %v767, 64
    %v771 = vpop.permute.xlu0 %770
    %v773 = vmul.f32 %v766, %v771
    %775 = vrot.lane.b32.xlu0 %v773, 32
    %v776 = vpop.permute.xlu0 %775
    %v778 = vadd.f32 %v768, %v776
    %v779 = vtanh.pop %v778
    %781 = vrot.lane.b32.xlu0 %v779, 64
    %v782 = vpop.permute.xlu0 %781
    %v784 = vmul.f32 %v766, %v782
    %786 = vrot.lane.b32.xlu0 %v784, 32
    %v787 = vpop.permute.xlu0 %786
    %789 = vst.msk [vmem:[#allocation3 + $0xa] sm:$0x3] %vm458, %v787
    %v790 = vld [vmem:[#allocation2 + $0xc] sm:$0x3]
    %v791 = vsel %vm350, %v787, 0
    %793 = vmatpush.msra.mxu0 0.0
    %794 = vmatpush.msra.mxu0 0.0
    %795 = vmatpush.msra.mxu0 0.0
    %796 = vmatpush.msra.mxu0 0.0
    %797 = vmatpush.msra.mxu0 0.0
    %798 = vmatpush.msra.mxu0 0.0
    %799 = vmatpush.msra.mxu0 0.0
    %800 = vmatpush.msra.mxu0 0.0
    %801 = vmatpush.msra.mxu0 0.0
    %802 = vmatpush.msra.mxu0 0.0
    %803 = vmatpush.msra.mxu0 0.0
    %804 = vmatpush.msra.mxu0 0.0
    %805 = vmatpush.msra.mxu0 %v385
    %806 = vmatpush.msra.mxu0 %v384
    %807 = vmatpush.msra.mxu0 %v383
    %808 = vmatpush.msra.mxu0 %v382
    %809 = vmatmul.f32.gmra.mxu0 %v791
    %v810 = vpop.f32.mrf.mxu0
    %v811 = vadd.f32 0.0, %v810
    %812 = vdwg.mxu0
    %v813 = vadd.f32 %v790, %v811
    %v814 = vxor.u32 %v813, 2147483648
    %v815 = vmul.f32 %v814, 1.442695
    %v816 = vpow.pop %v815
    %v817 = vadd.f32 %v816, 1.0
    %v818 = vrcp.pop %v817
    %v819 = vmul.f32 %v817, %v818
    %v820 = vsub.f32 1.0, %v819
    %v821 = vmul.f32 %v818, %v820
    %v822 = vadd.f32 %v818, %v821
    %vm823 = vweird.f32 %v817
    %vm824 = vweird.f32 %v818
    %vm825 = vmor %vm823, %vm824
    %v826 = vsel %vm825, %v818, %v822
    %v827 = vand.u32 2147483647, %v817
    %vm828 = vcmp.eq.f32.partialorder %v827, 8.507059e+37
    %v829 = vand.u32 %v817, 2147483648
    %v830 = vor.u32 1.1754944e-38, %v829
    %v831 = vsel %vm828, %v830, %v826
    %v832 = vmul.f32 1.0, %v831
    %v833 = vtanh.pop %v813
    %v834 = vmul.f32 %v832, %v778
    %836 = vrot.lane.b32.xlu0 %v833, 64
    %v837 = vpop.permute.xlu0 %836
    %v839 = vmul.f32 %v832, %v837
    %841 = vrot.lane.b32.xlu0 %v839, 32
    %v842 = vpop.permute.xlu0 %841
    %v844 = vadd.f32 %v834, %v842
    %v845 = vtanh.pop %v844
    %847 = vrot.lane.b32.xlu0 %v845, 64
    %v848 = vpop.permute.xlu0 %847
    %v850 = vmul.f32 %v832, %v848
    %852 = vrot.lane.b32.xlu0 %v850, 32
    %v853 = vpop.permute.xlu0 %852
    %855 = vst.msk [vmem:[#allocation3 + $0xc] sm:$0x3] %vm458, %v853
    %v856 = vld [vmem:[#allocation2 + $0xe] sm:$0x3]
    %v857 = vsel %vm350, %v853, 0
    %859 = vmatpush.msra.mxu0 0.0
    %860 = vmatpush.msra.mxu0 0.0
    %861 = vmatpush.msra.mxu0 0.0
    %862 = vmatpush.msra.mxu0 0.0
    %863 = vmatpush.msra.mxu0 0.0
    %864 = vmatpush.msra.mxu0 0.0
    %865 = vmatpush.msra.mxu0 0.0
    %866 = vmatpush.msra.mxu0 0.0
    %867 = vmatpush.msra.mxu0 0.0
    %868 = vmatpush.msra.mxu0 0.0
    %869 = vmatpush.msra.mxu0 0.0
    %870 = vmatpush.msra.mxu0 0.0
    %871 = vmatpush.msra.mxu0 %v385
    %872 = vmatpush.msra.mxu0 %v384
    %873 = vmatpush.msra.mxu0 %v383
    %874 = vmatpush.msra.mxu0 %v382
    %875 = vmatmul.f32.gmra.mxu0 %v857
    %v876 = vpop.f32.mrf.mxu0
    %v877 = vadd.f32 0.0, %v876
    %878 = vdwg.mxu0
    %v879 = vadd.f32 %v856, %v877
    %v880 = vxor.u32 %v879, 2147483648
    %v881 = vmul.f32 %v880, 1.442695
    %v882 = vpow.pop %v881
    %v883 = vadd.f32 %v882, 1.0
    %v884 = vrcp.pop %v883
    %v885 = vmul.f32 %v883, %v884
    %v886 = vsub.f32 1.0, %v885
    %v887 = vmul.f32 %v884, %v886
    %v888 = vadd.f32 %v884, %v887
    %vm889 = vweird.f32 %v883
    %vm890 = vweird.f32 %v884
    %vm891 = vmor %vm889, %vm890
    %v892 = vsel %vm891, %v884, %v888
    %v893 = vand.u32 2147483647, %v883
    %vm894 = vcmp.eq.f32.partialorder %v893, 8.507059e+37
    %v895 = vand.u32 %v883, 2147483648
    %v896 = vor.u32 1.1754944e-38, %v895
    %v897 = vsel %vm894, %v896, %v892
    %v898 = vmul.f32 1.0, %v897
    %v899 = vtanh.pop %v879
    %v900 = vmul.f32 %v898, %v844
    %902 = vrot.lane.b32.xlu0 %v899, 64
    %v903 = vpop.permute.xlu0 %902
    %v905 = vmul.f32 %v898, %v903
    %907 = vrot.lane.b32.xlu0 %v905, 32
    %v908 = vpop.permute.xlu0 %907
    %v910 = vadd.f32 %v900, %v908
    %v911 = vtanh.pop %v910
    %913 = vrot.lane.b32.xlu0 %v911, 64
    %v914 = vpop.permute.xlu0 %913
    %v916 = vmul.f32 %v898, %v914
    %918 = vrot.lane.b32.xlu0 %v916, 32
    %v919 = vpop.permute.xlu0 %918
    %921 = vst.msk [vmem:[#allocation3 + $0xe] sm:$0x3] %vm458, %v919
    %v922 = vld [vmem:[#allocation3] sm:$0xff]
    %v923 = vld [vmem:[#allocation3 + $0x8] sm:$0xff]
    %v924 = vld [vmem:[%s8] sm:$0xff]
    %v925 = vld [vmem:[%s8 + $0x8] sm:$0xff]
    %v926 = vld [vmem:[%s8 + $0x10] sm:$0xff]
    %v927 = vld [vmem:[%s8 + $0x18] sm:$0xff]
    %v928 = vld [vmem:[%s9] sm:$0x1]
    %v930 = vperm.slane %v928, 0
    %v933 = vsel %vm350, %v922, 0
    %v936 = vsel %vm350, %v923, 0
    %938 = vmatpush.msra.mxu0 0.0
    %939 = vmatpush.msra.mxu0 0.0
    %940 = vmatpush.msra.mxu0 0.0
    %941 = vmatpush.msra.mxu0 0.0
    %942 = vmatpush.msra.mxu0 0.0
    %943 = vmatpush.msra.mxu0 0.0
    %944 = vmatpush.msra.mxu0 0.0
    %945 = vmatpush.msra.mxu0 0.0
    %946 = vmatpush.msra.mxu0 0.0
    %947 = vmatpush.msra.mxu0 0.0
    %948 = vmatpush.msra.mxu0 0.0
    %949 = vmatpush.msra.mxu0 0.0
    %950 = vmatpush.msra.mxu0 %v927
    %951 = vmatpush.msra.mxu0 %v926
    %952 = vmatpush.msra.mxu0 %v925
    %953 = vmatpush.msra.mxu0 %v924
    %954 = vmatmul.f32.gmra.mxu0 %v933
    %v955 = vpop.f32.mrf.mxu0
    %v956 = vadd.f32 %v930, %v955
    %957 = vmatmul.f32.gmra.mxu0 %v936
    %v958 = vpop.f32.mrf.mxu0
    %v959 = vadd.f32 %v930, %v958
    %960 = vdwg.mxu0
    %v961 = vmax.f32 %v956, 0.0
    %v962 = vmax.f32 %v959, 0.0
    %v963 = vld [vmem:[%s10] sm:$0xff]
    %v964 = vld [vmem:[%s10 + $0x8] sm:$0xff]
    %v965 = vld [vmem:[%s10 + $0x10] sm:$0xff]
    %v966 = vld [vmem:[%s10 + $0x18] sm:$0xff]
    %v967 = vld [vmem:[%s10 + $0x20] sm:$0xff]
    %v968 = vld [vmem:[%s10 + $0x28] sm:$0xff]
    %v969 = vld [vmem:[%s10 + $0x30] sm:$0xff]
    %v970 = vld [vmem:[%s10 + $0x38] sm:$0xff]
    %v971 = vld [vmem:[#allocation4] sm:$0x1]
    %v973 = vperm.slane %v971, 0
    %vm975 = vcmask 523264
    %v977 = vsel %vm975, %v961, 0
    %v980 = vsel %vm975, %v962, 0
    %982 = vmatpush.msra.mxu0 0.0
    %983 = vmatpush.msra.mxu0 0.0
    %984 = vmatpush.msra.mxu0 0.0
    %985 = vmatpush.msra.mxu0 0.0
    %986 = vmatpush.msra.mxu0 0.0
    %987 = vmatpush.msra.mxu0 0.0
    %988 = vmatpush.msra.mxu0 0.0
    %989 = vmatpush.msra.mxu0 0.0
    %990 = vmatpush.msra.mxu0 %v970
    %991 = vmatpush.msra.mxu0 %v969
    %992 = vmatpush.msra.mxu0 %v968
    %993 = vmatpush.msra.mxu0 %v967
    %994 = vmatpush.msra.mxu0 %v966
    %995 = vmatpush.msra.mxu0 %v965
    %996 = vmatpush.msra.mxu0 %v964
    %997 = vmatpush.msra.mxu0 %v963
    %998 = vmatmul.f32.gmra.mxu0 %v977
    %v999 = vpop.f32.mrf.mxu0
    %v1000 = vadd.f32 %v973, %v999
    %1001 = vmatmul.f32.gmra.mxu0 %v980
    %v1002 = vpop.f32.mrf.mxu0
    %v1003 = vadd.f32 %v973, %v1002
    %1004 = vdwg.mxu0
    %v1005 = vld [vmem:[%s15] sm:$0xff]
    %v1006 = vld [vmem:[%s15 + $0x8] sm:$0xff]
    %vm1007 = vcmp.gt.f32.partialorder %v1005, 0.5
    %vm1008 = vcmp.gt.f32.partialorder %v1006, 0.5
    %1010 = vset.pattern.permute.xlu0 0
    %1011 = vperm.xlu0 %1010, %v1000
    %v1012 = vpop.permute.xlu0 %1011
    %1015 = vset.pattern.permute.xlu0 0
    %1016 = vperm.xlu0 %1015, %v1003
    %v1017 = vpop.permute.xlu0 %1016
    %v1019 = vsel %vm1007, %v1012, -inf
    %v1020 = vsel %vm1008, %v1017, -inf
    %vm1021 = vcmask 15360
    %v1022 = vsel %vm1021, %v1019, -inf
    %v1023 = vsel %vm1021, %v1020, -inf
    %v1024 = vmax.f32 %v1022, %v1023
    %v1025 = vrot.slane %v1024, 4
    %v1026 = vmax.f32 %v1024, %v1025
    %v1027 = vrot.slane %v1026, 2
    %v1028 = vmax.f32 %v1026, %v1027
    %v1029 = vrot.slane %v1028, 1
    %v1030 = vmax.f32 %v1028, %v1029
    %v1031 = vmul.f32 %v1005, %v1030
    %v1032 = vmul.f32 %v1006, %v1030
    %v1033 = vsel %vm1021, %v1031, 0.0
    %1034 = vadd.xlane.f32.xlu0 %v1033
    %v1035 = vpop.xlane.xlu0 %1034
    %v1036 = vsel %vm1021, %v1032, 0.0
    %1037 = vadd.xlane.f32.xlu0 %v1036
    %v1038 = vpop.xlane.xlu0 %1037
    %v1039 = vsub.f32 %v1000, %v1035
    %v1040 = vsub.f32 %v1003, %v1038
    %v1041 = vmul.f32 %v1039, 1.442695
    %v1042 = vpow.pop %v1041
    %v1043 = vmul.f32 %v1040, 1.442695
    %v1044 = vpow.pop %v1043
    %v1045 = vld [vmem:[%s14] sm:$0x3]
    %1047 = vset.pattern.permute.xlu0 0
    %1048 = vperm.xlu0 %1047, %v1042
    %v1049 = vpop.permute.xlu0 %1048
    %1052 = vset.pattern.permute.xlu0 0
    %1053 = vperm.xlu0 %1052, %v1044
    %v1054 = vpop.permute.xlu0 %1053
    %v1056 = vmul.f32 %v1049, %v922
    %v1057 = vmul.f32 %v1054, %v923
    %vm1058 = vcmask 130048
    %v1060 = vsel %vm1058, %v1045, 0
    %1062 = vmatpush.msra.mxu0 0.0
    %1063 = vmatpush.msra.mxu0 0.0
    %1064 = vmatpush.msra.mxu0 0.0
    %1065 = vmatpush.msra.mxu0 0.0
    %1066 = vmatpush.msra.mxu0 0.0
    %1067 = vmatpush.msra.mxu0 0.0
    %1068 = vmatpush.msra.mxu0 0.0
    %1069 = vmatpush.msra.mxu0 0.0
    %1070 = vmatpush.msra.mxu0 0.0
    %1071 = vmatpush.msra.mxu0 0.0
    %1072 = vmatpush.msra.mxu0 0.0
    %1073 = vmatpush.msra.mxu0 0.0
    %1074 = vmatpush.msra.mxu0 0.0
    %1075 = vmatpush.msra.mxu0 0.0
    %1076 = vmatpush.msra.mxu0 %v1057
    %1077 = vmatpush.msra.mxu0 %v1056
    %1078 = vmatmul.f32.gmra.mxu0 %v1060
    %v1079 = vpop.f32.mrf.mxu0
    %v1080 = vadd.f32 0.0, %v1079
    %1081 = vdwg.mxu0
    %1082 = vmatpush.msra.mxu0 0.0
    %1083 = vmatpush.msra.mxu0 0.0
    %1084 = vmatpush.msra.mxu0 0.0
    %1085 = vmatpush.msra.mxu0 0.0
    %1086 = vmatpush.msra.mxu0 0.0
    %1087 = vmatpush.msra.mxu0 0.0
    %1088 = vmatpush.msra.mxu0 0.0
    %1089 = vmatpush.msra.mxu0 0.0
    %1090 = vmatpush.msra.mxu0 0.0
    %1091 = vmatpush.msra.mxu0 0.0
    %1092 = vmatpush.msra.mxu0 0.0
    %1093 = vmatpush.msra.mxu0 0.0
    %1094 = vmatpush.msra.mxu0 0.0
    %1095 = vmatpush.msra.mxu0 0.0
    %1096 = vmatpush.msra.mxu0 %v1044
    %1097 = vmatpush.msra.mxu0 %v1042
    %1098 = vmatmul.f32.gmra.mxu0 %v1060
    %v1099 = vpop.f32.mrf.mxu0
    %v1100 = vadd.f32 0.0, %v1099
    %1101 = vdwg.mxu0
    %1103 = vset.pattern.permute.xlu0 0
    %1104 = vperm.xlu0 %1103, %v1100
    %v1105 = vpop.permute.xlu0 %1104
    %v1107 = vrcp.pop %v1105
    %v1108 = vmul.f32 %v1105, %v1107
    %v1109 = vsub.f32 1.0, %v1108
    %v1110 = vmul.f32 %v1107, %v1109
    %v1111 = vadd.f32 %v1107, %v1110
    %vm1112 = vweird.f32 %v1105
    %vm1113 = vweird.f32 %v1107
    %vm1114 = vmor %vm1112, %vm1113
    %v1115 = vsel %vm1114, %v1107, %v1111
    %v1116 = vand.u32 2147483647, %v1105
    %vm1117 = vcmp.eq.f32.partialorder %v1116, 8.507059e+37
    %v1118 = vand.u32 %v1105, 2147483648
    %v1119 = vor.u32 1.1754944e-38, %v1118
    %v1120 = vsel %vm1117, %v1119, %v1115
    %v1121 = vmul.f32 %v1080, %v1120
    %v1122 = vld [vmem:[%s12] sm:$0xff]
    %v1123 = vld [vmem:[%s12 + $0x8] sm:$0xff]
    %v1124 = vld [vmem:[%s12 + $0x10] sm:$0xff]
    %v1125 = vld [vmem:[%s12 + $0x18] sm:$0xff]
    %v1126 = vld [vmem:[%s13] sm:$0x1]
    %v1128 = vperm.slane %v1126, 0
    %v1131 = vsel %vm350, %v1121, 0
    %1133 = vmatpush.msra.mxu0 0.0
    %1134 = vmatpush.msra.mxu0 0.0
    %1135 = vmatpush.msra.mxu0 0.0
    %1136 = vmatpush.msra.mxu0 0.0
    %1137 = vmatpush.msra.mxu0 0.0
    %1138 = vmatpush.msra.mxu0 0.0
    %1139 = vmatpush.msra.mxu0 0.0
    %1140 = vmatpush.msra.mxu0 0.0
    %1141 = vmatpush.msra.mxu0 0.0
    %1142 = vmatpush.msra.mxu0 0.0
    %1143 = vmatpush.msra.mxu0 0.0
    %1144 = vmatpush.msra.mxu0 0.0
    %1145 = vmatpush.msra.mxu0 %v1125
    %1146 = vmatpush.msra.mxu0 %v1124
    %1147 = vmatpush.msra.mxu0 %v1123
    %1148 = vmatpush.msra.mxu0 %v1122
    %1149 = vmatmul.f32.gmra.mxu0 %v1131
    %v1150 = vpop.f32.mrf.mxu0
    %v1151 = vadd.f32 %v1128, %v1150
    %1152 = vdwg.mxu0
    %vm1153 = vcmask 9216
    %v1154 = vsel %vm1153, %v1151, -inf
    %1155 = vmax.xlane.f32.xlu0 %v1154
    %v1156 = vpop.xlane.xlu0 %1155
    %v1157 = vsub.f32 %v1151, %v1156
    %v1158 = vmul.f32 %v1157, 1.442695
    %v1159 = vpow.pop %v1158
    %v1160 = vsel %vm1153, %v1159, 0.0
    %1161 = vadd.xlane.f32.xlu0 %v1160
    %v1162 = vpop.xlane.xlu0 %1161
    %v1163 = vrcp.pop %v1162
    %v1164 = vmul.f32 %v1162, %v1163
    %v1165 = vsub.f32 1.0, %v1164
    %v1166 = vmul.f32 %v1163, %v1165
    %v1167 = vadd.f32 %v1163, %v1166
    %vm1168 = vweird.f32 %v1162
    %vm1169 = vweird.f32 %v1163
    %vm1170 = vmor %vm1168, %vm1169
    %v1171 = vsel %vm1170, %v1163, %v1167
    %v1172 = vand.u32 2147483647, %v1162
    %vm1173 = vcmp.eq.f32.partialorder %v1172, 8.507059e+37
    %v1174 = vand.u32 %v1162, 2147483648
    %v1175 = vor.u32 1.1754944e-38, %v1174
    %v1176 = vsel %vm1173, %v1175, %v1171
    %v1177 = vmul.f32 %v1159, %v1176
    %1178 = vst.msk [vmem:[#allocation5] sm:$0x3] %vm1153, %v1177
    // Predicated region
    $region66: #{lstm_model_forward.1} parent=1 // pred_check
      _
    $region67: #{lstm_model_forward.1} parent=1 // pred_check_branch
      %1180 = sbr.rel (0) target = $region69
    $region68: #{lstm_model_forward.1} parent=1 // pred_region
      %1182 = vsyncadd [#allocation6], 0
      %s1184 = sshll.u32 [#allocation5], 4
      %s1185 = int_to_ptr.vmem [resolvable:$true] %s1184
      %s1186 = sshll.u32 %s16, 4
      %s1187 = int_to_ptr.hbm [resolvable:$true] %s1186
      %1189 = dma.vmem_to_hbm [thread:$0]  %s1185, 32, %s1187, [#allocation6]
    $region69: #{lstm_model_forward.1} parent=1 // pred_fallthru
      _
    // Predicated region
    $region70: #{lstm_model_forward.1} parent=1 // pred_check
      _
    $region71: #{lstm_model_forward.1} parent=1 // pred_check_branch
      %1191 = sbr.rel (0) target = $region73
    $region72: #{lstm_model_forward.1} parent=1 // pred_region
      %1193 = dma.done [#allocation6], 32
    $region73: #{lstm_model_forward.1} parent=1 // pred_fallthru
      _
    %1194 = vsyncpa [#allocation6], 1

</llo_original>
